<compile_context>
chip_gen: v6e
topology: v6e:2x2x1
jax: 0.10.0
libtpu: 0.0.40
codegen_flags: <defaults>
</compile_context>

<pallas_src>
import jax
import jax.numpy as jnp
from jax.experimental import pallas as pl
from jax.experimental.pallas import tpu as pltpu

INPUT_SIZE = 784
HIDDEN1 = 500
HIDDEN2 = 250
NUM_CLASSES = 10

# Lane-aligned (multiple-of-128) padded widths.
H1_PAD = 512
H2_PAD = 256
OUT_PAD = 128

BN_EPS = 1e-5


def _mlp_kernel(x_ref,
                w1_ref, g1_ref, be1_ref,
                w2_ref, g2_ref, be2_ref,
                w3_ref, b3_ref,
                o_ref):
    x = x_ref[...]                                  # (B, 784) bf16 (cast in wrapper)
    B = x_ref.shape[0]                              # static batch size
    inv_b = 1.0 / B
    ones_row = jnp.ones((1, B), jnp.float32)        # for MXU column sums

    def bn_relu(h, g_ref, be_ref):
        # Column sum / sum-of-squares via tiny (1,B)x(B,N) MXU matmuls — ~784x
        # cheaper than the main matmuls and keeps the reductions off the VPU.
        s1 = jnp.dot(ones_row, h, preferred_element_type=jnp.float32)      # (1, N)
        s2 = jnp.dot(ones_row, h * h, preferred_element_type=jnp.float32)  # (1, N)
        mean = s1 * inv_b
        var = jnp.maximum(s2 * inv_b - mean * mean, 0.0)   # biased (training) var
        scale = g_ref[...] * jax.lax.rsqrt(var + BN_EPS)
        shift = be_ref[...] - mean * scale
        return jnp.maximum(h * scale + shift, 0.0)

    # ---- fc1 (bias omitted: absorbed by batch-stat BN) + bn1 + relu1 ----
    h1 = jnp.dot(x, w1_ref[...], preferred_element_type=jnp.float32)
    h1 = bn_relu(h1, g1_ref, be1_ref)                        # (B, 512) f32

    # ---- fc2 (bias omitted) + bn2 + relu2 ----
    h2 = jnp.dot(h1.astype(jnp.bfloat16), w2_ref[...],
                 preferred_element_type=jnp.float32)
    h2 = bn_relu(h2, g2_ref, be2_ref)                        # (B, 256) f32

    # ---- fc3 (real output bias kept) ----
    o_ref[...] = (jnp.dot(h2.astype(jnp.bfloat16), w3_ref[...],
                          preferred_element_type=jnp.float32)
                  + b3_ref[...]).astype(o_ref.dtype)         # (B, 128) f32


def _vmem_limit_bytes():
    # 48 MiB is safe everywhere (v7x physical VMEM is 64 MiB); raise to 96 MiB on
    # v5e/v6e (128 MiB physical) so larger batches stay un-tiled.
    try:
        phys = pltpu.get_tpu_info().vmem_capacity_bytes
    except Exception:
        return 48 << 20
    return (96 << 20) if phys >= (96 << 20) else (48 << 20)


def neural_net_forward(x, params):
    """x: (B, 784) float32. Returns (B, 10) float32 logits (training-mode BN)."""
    B = x.shape[0]
    # Cast x to bf16 outside the kernel: halves x HBM->VMEM bytes; the MXU operand
    # was already bf16 so accuracy is unchanged.
    x_bf16 = x.astype(jnp.bfloat16)

    vmem_spec = pl.BlockSpec(memory_space=pltpu.MemorySpace.VMEM)
    args = (
        x_bf16,
        params["w1_t"], params["g1"], params["be1"],
        params["w2_t"], params["g2"], params["be2"],
        params["w3_t"], params["b3"],
    )

    weight_elems = INPUT_SIZE * H1_PAD + H1_PAD * H2_PAD + H2_PAD * OUT_PAD
    bn_sum_flops = 2 * B * (2 * H1_PAD + 2 * H2_PAD)          # (1,B)x(B,N) sums
    cost = pl.CostEstimate(
        flops=2 * B * weight_elems + bn_sum_flops,
        transcendentals=H1_PAD + H2_PAD,                      # rsqrt per BN feature
        bytes_accessed=(x_bf16.size * 2                       # x (bf16)
                        + weight_elems * 2                    # weights (bf16)
                        + (2 * H1_PAD + 2 * H2_PAD + OUT_PAD) * 4  # gamma/beta/b3
                        + B * OUT_PAD * 4),                   # padded output (f32)
    )

    out_padded = pl.pallas_call(
        _mlp_kernel,
        out_shape=jax.ShapeDtypeStruct((B, OUT_PAD), jnp.float32),
        in_specs=[vmem_spec] * len(args),
        out_specs=vmem_spec,
        compiler_params=pltpu.CompilerParams(vmem_limit_bytes=_vmem_limit_bytes()),
        cost_estimate=cost,
    )(*args)
    return out_padded[:, :NUM_CLASSES]


def init_params(key):
    """PyTorch-default init (Linear: U(+-1/sqrt(fan_in)); BN: gamma=1, beta=0),
    zero-padded to lane-aligned shapes, weights pre-transposed and stored bf16.
    fc1/fc2 biases are not materialized: with batch-stat BN right after them they
    cancel exactly and contribute nothing to the forward output."""
    ks = jax.random.split(key, 4)

    def linear_w(kw, fan_in, fan_out, pad_in, pad_out):
        bound = 1.0 / (fan_in ** 0.5)
        w_t = jax.random.uniform(kw, (fan_in, fan_out), jnp.float32, -bound, bound)
        w_pad = jnp.zeros((pad_in, pad_out), jnp.float32).at[:fan_in, :fan_out].set(w_t)
        return w_pad.astype(jnp.bfloat16)

    w1_t = linear_w(ks[0], INPUT_SIZE, HIDDEN1, INPUT_SIZE, H1_PAD)
    w2_t = linear_w(ks[1], HIDDEN1, HIDDEN2, H1_PAD, H2_PAD)

    bound3 = 1.0 / (HIDDEN2 ** 0.5)
    w3 = jax.random.uniform(ks[2], (HIDDEN2, NUM_CLASSES), jnp.float32, -bound3, bound3)
    b3 = jax.random.uniform(ks[3], (NUM_CLASSES,), jnp.float32, -bound3, bound3)
    w3_t = (jnp.zeros((H2_PAD, OUT_PAD), jnp.float32)
            .at[:HIDDEN2, :NUM_CLASSES].set(w3).astype(jnp.bfloat16))
    b3_pad = jnp.zeros((1, OUT_PAD), jnp.float32).at[0, :NUM_CLASSES].set(b3)

    # gamma padding MUST be 0 so rsqrt(0+eps) noise in padded lanes stays zeroed.
    g1 = jnp.zeros((1, H1_PAD), jnp.float32).at[0, :HIDDEN1].set(1.0)
    g2 = jnp.zeros((1, H2_PAD), jnp.float32).at[0, :HIDDEN2].set(1.0)
    return {
        "w1_t": w1_t, "g1": g1, "be1": jnp.zeros((1, H1_PAD), jnp.float32),
        "w2_t": w2_t, "g2": g2, "be2": jnp.zeros((1, H2_PAD), jnp.float32),
        "w3_t": w3_t, "b3": b3_pad,
    }


if __name__ == "__main__":
    key = jax.random.PRNGKey(0)
    kx, kp = jax.random.split(key)
    B = 8
    x = jax.random.normal(kx, (B, INPUT_SIZE), jnp.float32)
    params = init_params(kp)

    out = neural_net_forward(x, params)
    out = jax.block_until_ready(out)
    assert out.shape == (B, NUM_CLASSES) and out.dtype == jnp.float32
    assert bool(jnp.all(jnp.isfinite(out)))
    print("KERNEL_OK")
</pallas_src>

<mosaic_0001>
module attributes {stable_mosaic.version = 11 : i64} {
  func.func @_mlp_kernel(%arg0: memref<8x784xbf16, #tpu.memory_space<vmem>>, %arg1: memref<784x512xbf16, #tpu.memory_space<vmem>>, %arg2: memref<1x512xf32, #tpu.memory_space<vmem>>, %arg3: memref<1x512xf32, #tpu.memory_space<vmem>>, %arg4: memref<512x256xbf16, #tpu.memory_space<vmem>>, %arg5: memref<1x256xf32, #tpu.memory_space<vmem>>, %arg6: memref<1x256xf32, #tpu.memory_space<vmem>>, %arg7: memref<256x128xbf16, #tpu.memory_space<vmem>>, %arg8: memref<1x128xf32, #tpu.memory_space<vmem>>, %arg9: memref<8x128xf32, #tpu.memory_space<vmem>>) attributes {dimension_semantics = [], scalar_prefetch = 0 : i64, scratch_operands = 0 : i64, tpu.core_type = #tpu.core_type<tc>} {
    %c0 = arith.constant 0 : index
    %c0_0 = arith.constant 0 : index
    %0 = vector.load %arg0[%c0, %c0_0] : memref<8x784xbf16, #tpu.memory_space<vmem>>, vector<8x784xbf16>
    %cst = arith.constant 1.000000e+00 : f32
    %1 = vector.broadcast %cst : f32 to vector<1x8xf32>
    %c0_1 = arith.constant 0 : index
    %c0_2 = arith.constant 0 : index
    %2 = vector.load %arg1[%c0_1, %c0_2] : memref<784x512xbf16, #tpu.memory_space<vmem>>, vector<784x512xbf16>
    %cst_3 = arith.constant dense<0.000000e+00> : vector<8x512xf32>
    %3 = tpu.matmul %0, %2, %cst_3 {dimension_numbers = #tpu.dot_dimension_numbers<[1], [0], [0], [1], [0, 0, 1, 1], [], []>} : vector<8x784xbf16>, vector<784x512xbf16>, vector<8x512xf32> -> vector<8x512xf32>
    %cst_4 = arith.constant dense<0.000000e+00> : vector<1x512xf32>
    %4 = tpu.matmul %1, %3, %cst_4 {dimension_numbers = #tpu.dot_dimension_numbers<[1], [0], [0], [1], [0, 0, 1, 1], [], []>} : vector<1x8xf32>, vector<8x512xf32>, vector<1x512xf32> -> vector<1x512xf32>
    %5 = arith.mulf %3, %3 : vector<8x512xf32>
    %cst_5 = arith.constant dense<0.000000e+00> : vector<1x512xf32>
    %6 = tpu.matmul %1, %5, %cst_5 {dimension_numbers = #tpu.dot_dimension_numbers<[1], [0], [0], [1], [0, 0, 1, 1], [], []>} : vector<1x8xf32>, vector<8x512xf32>, vector<1x512xf32> -> vector<1x512xf32>
    %cst_6 = arith.constant 1.250000e-01 : f32
    %7 = vector.broadcast %cst_6 : f32 to vector<1x512xf32>
    %8 = arith.mulf %4, %7 : vector<1x512xf32>
    %cst_7 = arith.constant 1.250000e-01 : f32
    %9 = vector.broadcast %cst_7 : f32 to vector<1x512xf32>
    %10 = arith.mulf %6, %9 : vector<1x512xf32>
    %11 = arith.mulf %8, %8 : vector<1x512xf32>
    %12 = arith.subf %10, %11 : vector<1x512xf32>
    %cst_8 = arith.constant 0.000000e+00 : f32
    %13 = vector.broadcast %cst_8 : f32 to vector<1x512xf32>
    %14 = arith.maximumf %12, %13 : vector<1x512xf32>
    %c0_9 = arith.constant 0 : index
    %c0_10 = arith.constant 0 : index
    %15 = vector.load %arg2[%c0_9, %c0_10] : memref<1x512xf32, #tpu.memory_space<vmem>>, vector<1x512xf32>
    %cst_11 = arith.constant 9.99999974E-6 : f32
    %16 = vector.broadcast %cst_11 : f32 to vector<1x512xf32>
    %17 = arith.addf %14, %16 : vector<1x512xf32>
    %18 = math.rsqrt %17 : vector<1x512xf32>
    %19 = arith.mulf %15, %18 : vector<1x512xf32>
    %c0_12 = arith.constant 0 : index
    %c0_13 = arith.constant 0 : index
    %20 = vector.load %arg3[%c0_12, %c0_13] : memref<1x512xf32, #tpu.memory_space<vmem>>, vector<1x512xf32>
    %21 = arith.mulf %8, %19 : vector<1x512xf32>
    %22 = arith.subf %20, %21 : vector<1x512xf32>
    %23 = vector.broadcast %19 : vector<1x512xf32> to vector<8x512xf32>
    %24 = arith.mulf %3, %23 : vector<8x512xf32>
    %25 = vector.broadcast %22 : vector<1x512xf32> to vector<8x512xf32>
    %26 = arith.addf %24, %25 : vector<8x512xf32>
    %cst_14 = arith.constant 0.000000e+00 : f32
    %27 = vector.broadcast %cst_14 : f32 to vector<8x512xf32>
    %28 = arith.maximumf %26, %27 : vector<8x512xf32>
    %29 = arith.truncf %28 : vector<8x512xf32> to vector<8x512xbf16>
    %c0_15 = arith.constant 0 : index
    %c0_16 = arith.constant 0 : index
    %30 = vector.load %arg4[%c0_15, %c0_16] : memref<512x256xbf16, #tpu.memory_space<vmem>>, vector<512x256xbf16>
    %cst_17 = arith.constant dense<0.000000e+00> : vector<8x256xf32>
    %31 = tpu.matmul %29, %30, %cst_17 {dimension_numbers = #tpu.dot_dimension_numbers<[1], [0], [0], [1], [0, 0, 1, 1], [], []>} : vector<8x512xbf16>, vector<512x256xbf16>, vector<8x256xf32> -> vector<8x256xf32>
    %cst_18 = arith.constant dense<0.000000e+00> : vector<1x256xf32>
    %32 = tpu.matmul %1, %31, %cst_18 {dimension_numbers = #tpu.dot_dimension_numbers<[1], [0], [0], [1], [0, 0, 1, 1], [], []>} : vector<1x8xf32>, vector<8x256xf32>, vector<1x256xf32> -> vector<1x256xf32>
    %33 = arith.mulf %31, %31 : vector<8x256xf32>
    %cst_19 = arith.constant dense<0.000000e+00> : vector<1x256xf32>
    %34 = tpu.matmul %1, %33, %cst_19 {dimension_numbers = #tpu.dot_dimension_numbers<[1], [0], [0], [1], [0, 0, 1, 1], [], []>} : vector<1x8xf32>, vector<8x256xf32>, vector<1x256xf32> -> vector<1x256xf32>
    %cst_20 = arith.constant 1.250000e-01 : f32
    %35 = vector.broadcast %cst_20 : f32 to vector<1x256xf32>
    %36 = arith.mulf %32, %35 : vector<1x256xf32>
    %cst_21 = arith.constant 1.250000e-01 : f32
    %37 = vector.broadcast %cst_21 : f32 to vector<1x256xf32>
    %38 = arith.mulf %34, %37 : vector<1x256xf32>
    %39 = arith.mulf %36, %36 : vector<1x256xf32>
    %40 = arith.subf %38, %39 : vector<1x256xf32>
    %cst_22 = arith.constant 0.000000e+00 : f32
    %41 = vector.broadcast %cst_22 : f32 to vector<1x256xf32>
    %42 = arith.maximumf %40, %41 : vector<1x256xf32>
    %c0_23 = arith.constant 0 : index
    %c0_24 = arith.constant 0 : index
    %43 = vector.load %arg5[%c0_23, %c0_24] : memref<1x256xf32, #tpu.memory_space<vmem>>, vector<1x256xf32>
    %cst_25 = arith.constant 9.99999974E-6 : f32
    %44 = vector.broadcast %cst_25 : f32 to vector<1x256xf32>
    %45 = arith.addf %42, %44 : vector<1x256xf32>
    %46 = math.rsqrt %45 : vector<1x256xf32>
    %47 = arith.mulf %43, %46 : vector<1x256xf32>
    %c0_26 = arith.constant 0 : index
    %c0_27 = arith.constant 0 : index
    %48 = vector.load %arg6[%c0_26, %c0_27] : memref<1x256xf32, #tpu.memory_space<vmem>>, vector<1x256xf32>
    %49 = arith.mulf %36, %47 : vector<1x256xf32>
    %50 = arith.subf %48, %49 : vector<1x256xf32>
    %51 = vector.broadcast %47 : vector<1x256xf32> to vector<8x256xf32>
    %52 = arith.mulf %31, %51 : vector<8x256xf32>
    %53 = vector.broadcast %50 : vector<1x256xf32> to vector<8x256xf32>
    %54 = arith.addf %52, %53 : vector<8x256xf32>
    %cst_28 = arith.constant 0.000000e+00 : f32
    %55 = vector.broadcast %cst_28 : f32 to vector<8x256xf32>
    %56 = arith.maximumf %54, %55 : vector<8x256xf32>
    %57 = arith.truncf %56 : vector<8x256xf32> to vector<8x256xbf16>
    %c0_29 = arith.constant 0 : index
    %c0_30 = arith.constant 0 : index
    %58 = vector.load %arg7[%c0_29, %c0_30] : memref<256x128xbf16, #tpu.memory_space<vmem>>, vector<256x128xbf16>
    %cst_31 = arith.constant dense<0.000000e+00> : vector<8x128xf32>
    %59 = tpu.matmul %57, %58, %cst_31 {dimension_numbers = #tpu.dot_dimension_numbers<[1], [0], [0], [1], [0, 0, 1, 1], [], []>} : vector<8x256xbf16>, vector<256x128xbf16>, vector<8x128xf32> -> vector<8x128xf32>
    %c0_32 = arith.constant 0 : index
    %c0_33 = arith.constant 0 : index
    %60 = vector.load %arg8[%c0_32, %c0_33] : memref<1x128xf32, #tpu.memory_space<vmem>>, vector<1x128xf32>
    %61 = vector.broadcast %60 : vector<1x128xf32> to vector<8x128xf32>
    %62 = arith.addf %59, %61 : vector<8x128xf32>
    %c0_34 = arith.constant 0 : index
    %c0_35 = arith.constant 0 : index
    %63 = vector.load %arg9[%c0_34, %c0_35] : memref<8x128xf32, #tpu.memory_space<vmem>>, vector<8x128xf32>
    tpu.vector_store %arg9[%c0_34, %c0_35], %62 {strides = array<i32>} : memref<8x128xf32, #tpu.memory_space<vmem>>, vector<8x128xf32>,
    return
  }
}

</mosaic_0001>

<llo_original>
// kernel: tpu_custom_call.1
$region0: #{tpu_custom_call.1}
  #allocation0 [shape = 'u32[]', space=smem, size = 0x4, offset = 0x4, fixed_abs, tag = 'smem constant byte address 0x4 - core index']
  #allocation1 [shape = 'u32[144,128]{1,0:T(1,128)}', space=vmem, size = 0x12000, scoped, tag = 'internal scratch']
  %s0 = inlined_call_operand.hbm [shape: bf16[8,784], index: 0, kind: input, shape index: {}]
  %s1 = inlined_call_operand.hbm [shape: bf16[784,512], index: 1, kind: input, shape index: {}]
  %s2 = inlined_call_operand.hbm [shape: f32[1,512], index: 2, kind: input, shape index: {}]
  %s3 = inlined_call_operand.vmem [shape: f32[1,512], index: 3, kind: input, shape index: {}]
  %s4 = inlined_call_operand.hbm [shape: bf16[512,256], index: 4, kind: input, shape index: {}]
  %s5 = inlined_call_operand.vmem [shape: f32[1,256], index: 5, kind: input, shape index: {}]
  %s6 = inlined_call_operand.vmem [shape: f32[1,256], index: 6, kind: input, shape index: {}]
  %s7 = inlined_call_operand.hbm [shape: bf16[256,128], index: 7, kind: input, shape index: {}]
  %s8 = inlined_call_operand.vmem [shape: f32[1,128], index: 8, kind: input, shape index: {}]
  %s9 = inlined_call_operand.hbm [shape: f32[8,128], index: 9, kind: output, shape index: {}]
  %s10 = sld [smem:[#allocation0]]
  $region66: #{tpu_custom_call.1} parent=0
    _
  %s12 = ssub.s32 1, %s10
  %s13 = scalar_select 0, %s12, %s10
  $region1: #{tpu_custom_call.1} parent=0
    #allocation2 [shape = 'u8[14336]{0}', space=vmem, size = 0x3800, scoped, tag = 'input window, operand 0, single buffered']
    #allocation3 [shape = 's32[1]{0}', space=sflag, size = 0x4, scoped, tag = 'scoped memory for tpu_custom_call.1']
    #allocation4 [shape = 's32[1]{0}', space=sflag, size = 0x4, scoped, tag = 'scoped memory for tpu_custom_call.1']
    #allocation5 [shape = 'u8[802816]{0}', space=vmem, size = 0xc4000, scoped, tag = 'input window, operand 1, single buffered']
    #allocation6 [shape = 's32[1]{0}', space=sflag, size = 0x4, scoped, tag = 'scoped memory for tpu_custom_call.1']
    #allocation7 [shape = 'u8[2048]{0}', space=vmem, size = 0x800, scoped, tag = 'input window, operand 2, single buffered']
    #allocation8 [shape = 'u8[262144]{0}', space=vmem, size = 0x40000, scoped, tag = 'input window, operand 4, single buffered']
    #allocation9 [shape = 's32[1]{0}', space=sflag, size = 0x4, scoped, tag = 'scoped memory for tpu_custom_call.1']
    #allocation10 [shape = 'u8[65536]{0}', space=vmem, size = 0x10000, scoped, tag = 'input window, operand 7, single buffered']
    #allocation11 [shape = 'u8[4096]{0}', space=vmem, size = 0x1000, scoped, tag = 'output window, operand 0, single buffered']
    %14 = vsyncpa [#allocation3], 0
    %15 = vsyncpa [#allocation6], 0
    %16 = vsyncpa [#allocation9], 0
    %17 = vsyncpa [#allocation4], 0
    // Predicated region
    $region2: #{tpu_custom_call.1} parent=1 // pred_check
      _
    $region3: #{tpu_custom_call.1} parent=1 // pred_check_branch
      %19 = sbr.rel (0) target = $region5
    $region4: #{tpu_custom_call.1} parent=1 // pred_region
      %s21 = ssub.s32 448, 448
      %22 = vsyncadd [#allocation3], %s21
      %s24 = sshll.u32 [#allocation2], 4
      %s25 = int_to_ptr.vmem [resolvable:$true] %s24
      %27 = dma.hbm_to_vmem [thread:$0]  %s0, 448, %s25, [#allocation3]
    $region5: #{tpu_custom_call.1} parent=1 // pred_fallthru
      _
    // Predicated region
    $region6: #{tpu_custom_call.1} parent=1 // pred_check
      _
    $region7: #{tpu_custom_call.1} parent=1 // pred_check_branch
      %29 = sbr.rel (0) target = $region9
    $region8: #{tpu_custom_call.1} parent=1 // pred_region
      %s31 = ssub.s32 25088, 25088
      %32 = vsyncadd [#allocation6], %s31
      %s33 = sshll.u32 [#allocation5], 4
      %s34 = int_to_ptr.vmem [resolvable:$true] %s33
      %39 = dma.hbm_to_vmem [thread:$0]  %s1, 25088, %s34, [#allocation6], 256, 256, 16
    $region9: #{tpu_custom_call.1} parent=1 // pred_fallthru
      _
    // Predicated region
    $region10: #{tpu_custom_call.1} parent=1 // pred_check
      _
    $region11: #{tpu_custom_call.1} parent=1 // pred_check_branch
      %41 = sbr.rel (0) target = $region13
    $region12: #{tpu_custom_call.1} parent=1 // pred_region
      %s43 = ssub.s32 64, 64
      %44 = vsyncadd [#allocation6], %s43
      %s46 = sshll.u32 [#allocation7], 4
      %s47 = int_to_ptr.vmem [resolvable:$true] %s46
      %49 = dma.hbm_to_vmem [thread:$0]  %s2, 64, %s47, [#allocation6]
    $region13: #{tpu_custom_call.1} parent=1 // pred_fallthru
      _
    // Predicated region
    $region14: #{tpu_custom_call.1} parent=1 // pred_check
      _
    $region15: #{tpu_custom_call.1} parent=1 // pred_check_branch
      %51 = sbr.rel (0) target = $region17
    $region16: #{tpu_custom_call.1} parent=1 // pred_region
      _
    $region17: #{tpu_custom_call.1} parent=1 // pred_fallthru
      _
    // Predicated region
    $region18: #{tpu_custom_call.1} parent=1 // pred_check
      _
    $region19: #{tpu_custom_call.1} parent=1 // pred_check_branch
      %53 = sbr.rel (0) target = $region21
    $region20: #{tpu_custom_call.1} parent=1 // pred_region
      %s55 = ssub.s32 8192, 8192
      %56 = vsyncadd [#allocation9], %s55
      %s57 = sshll.u32 [#allocation8], 4
      %s58 = int_to_ptr.vmem [resolvable:$true] %s57
      %63 = dma.hbm_to_vmem [thread:$0]  %s4, 8192, %s58, [#allocation9], 128, 128, 8
    $region21: #{tpu_custom_call.1} parent=1 // pred_fallthru
      _
    // Predicated region
    $region22: #{tpu_custom_call.1} parent=1 // pred_check
      _
    $region23: #{tpu_custom_call.1} parent=1 // pred_check_branch
      %65 = sbr.rel (0) target = $region25
    $region24: #{tpu_custom_call.1} parent=1 // pred_region
      _
    $region25: #{tpu_custom_call.1} parent=1 // pred_fallthru
      _
    // Predicated region
    $region26: #{tpu_custom_call.1} parent=1 // pred_check
      _
    $region27: #{tpu_custom_call.1} parent=1 // pred_check_branch
      %67 = sbr.rel (0) target = $region29
    $region28: #{tpu_custom_call.1} parent=1 // pred_region
      _
    $region29: #{tpu_custom_call.1} parent=1 // pred_fallthru
      _
    // Predicated region
    $region30: #{tpu_custom_call.1} parent=1 // pred_check
      _
    $region31: #{tpu_custom_call.1} parent=1 // pred_check_branch
      %69 = sbr.rel (0) target = $region33
    $region32: #{tpu_custom_call.1} parent=1 // pred_region
      %s71 = ssub.s32 2048, 2048
      %72 = vsyncadd [#allocation9], %s71
      %s73 = sshll.u32 [#allocation10], 4
      %s74 = int_to_ptr.vmem [resolvable:$true] %s73
      %79 = dma.hbm_to_vmem [thread:$0]  %s7, 2048, %s74, [#allocation9], 64, 64, 4
    $region33: #{tpu_custom_call.1} parent=1 // pred_fallthru
      _
    // Predicated region
    $region34: #{tpu_custom_call.1} parent=1 // pred_check
      _
    $region35: #{tpu_custom_call.1} parent=1 // pred_check_branch
      %81 = sbr.rel (0) target = $region37
    $region36: #{tpu_custom_call.1} parent=1 // pred_region
      _
    $region37: #{tpu_custom_call.1} parent=1 // pred_fallthru
      _
    // Predicated region
    $region38: #{tpu_custom_call.1} parent=1 // pred_check
      _
    $region39: #{tpu_custom_call.1} parent=1 // pred_check_branch
      %83 = sbr.rel (0) target = $region41
    $region40: #{tpu_custom_call.1} parent=1 // pred_region
      %84 = dma.done [#allocation3], 448
    $region41: #{tpu_custom_call.1} parent=1 // pred_fallthru
      _
    // Predicated region
    $region42: #{tpu_custom_call.1} parent=1 // pred_check
      _
    $region43: #{tpu_custom_call.1} parent=1 // pred_check_branch
      %86 = sbr.rel (0) target = $region45
    $region44: #{tpu_custom_call.1} parent=1 // pred_region
      %87 = dma.done [#allocation6], 25088
    $region45: #{tpu_custom_call.1} parent=1 // pred_fallthru
      _
    // Predicated region
    $region46: #{tpu_custom_call.1} parent=1 // pred_check
      _
    $region47: #{tpu_custom_call.1} parent=1 // pred_check_branch
      %89 = sbr.rel (0) target = $region49
    $region48: #{tpu_custom_call.1} parent=1 // pred_region
      %90 = dma.done [#allocation6], 64
    $region49: #{tpu_custom_call.1} parent=1 // pred_fallthru
      _
    // Predicated region
    $region50: #{tpu_custom_call.1} parent=1 // pred_check
      _
    $region51: #{tpu_custom_call.1} parent=1 // pred_check_branch
      %92 = sbr.rel (0) target = $region53
    $region52: #{tpu_custom_call.1} parent=1 // pred_region
      %93 = dma.done [#allocation9], 8192
    $region53: #{tpu_custom_call.1} parent=1 // pred_fallthru
      _
    // Predicated region
    $region54: #{tpu_custom_call.1} parent=1 // pred_check
      _
    $region55: #{tpu_custom_call.1} parent=1 // pred_check_branch
      %95 = sbr.rel (0) target = $region57
    $region56: #{tpu_custom_call.1} parent=1 // pred_region
      %96 = dma.done [#allocation9], 2048
    $region57: #{tpu_custom_call.1} parent=1 // pred_fallthru
      _
    %v98 = vld [vmem:[#allocation2] sm:$0xff]
    %v99 = vld [vmem:[#allocation2 + $0x8] sm:$0xff]
    %v100 = vld [vmem:[#allocation2 + $0x10] sm:$0xff]
    %v101 = vld [vmem:[#allocation2 + $0x18] sm:$0xf]
    %v102 = vld [vmem:[#allocation5] sm:$0xff]
    %v103 = vld [vmem:[#allocation5 + $0x8] sm:$0xff]
    %v104 = vld [vmem:[#allocation5 + $0x10] sm:$0xff]
    %v105 = vld [vmem:[#allocation5 + $0x18] sm:$0xff]
    %v106 = vld [vmem:[#allocation5 + $0x20] sm:$0xff]
    %v107 = vld [vmem:[#allocation5 + $0x28] sm:$0xff]
    %v108 = vld [vmem:[#allocation5 + $0x30] sm:$0xff]
    %v109 = vld [vmem:[#allocation5 + $0x38] sm:$0xff]
    %v110 = vld [vmem:[#allocation5 + $0x40] sm:$0xff]
    %v111 = vld [vmem:[#allocation5 + $0x48] sm:$0xff]
    %v112 = vld [vmem:[#allocation5 + $0x50] sm:$0xff]
    %v113 = vld [vmem:[#allocation5 + $0x58] sm:$0xff]
    %v114 = vld [vmem:[#allocation5 + $0x60] sm:$0xff]
    %v115 = vld [vmem:[#allocation5 + $0x68] sm:$0xff]
    %v116 = vld [vmem:[#allocation5 + $0x70] sm:$0xff]
    %v117 = vld [vmem:[#allocation5 + $0x78] sm:$0xff]
    %v118 = vld [vmem:[#allocation5 + $0x80] sm:$0xff]
    %v119 = vld [vmem:[#allocation5 + $0x88] sm:$0xff]
    %v120 = vld [vmem:[#allocation5 + $0x90] sm:$0xff]
    %v121 = vld [vmem:[#allocation5 + $0x98] sm:$0xff]
    %v122 = vld [vmem:[#allocation5 + $0xa0] sm:$0xff]
    %v123 = vld [vmem:[#allocation5 + $0xa8] sm:$0xff]
    %v124 = vld [vmem:[#allocation5 + $0xb0] sm:$0xff]
    %v125 = vld [vmem:[#allocation5 + $0xb8] sm:$0xff]
    %v126 = vld [vmem:[#allocation5 + $0xc0] sm:$0xff]
    %v127 = vld [vmem:[#allocation5 + $0xc8] sm:$0xff]
    %v128 = vld [vmem:[#allocation5 + $0xd0] sm:$0xff]
    %v129 = vld [vmem:[#allocation5 + $0xd8] sm:$0xff]
    %v130 = vld [vmem:[#allocation5 + $0xe0] sm:$0xff]
    %v131 = vld [vmem:[#allocation5 + $0xe8] sm:$0xff]
    %v132 = vld [vmem:[#allocation5 + $0xf0] sm:$0xff]
    %v133 = vld [vmem:[#allocation5 + $0xf8] sm:$0xff]
    %v134 = vld [vmem:[#allocation5 + $0x100] sm:$0xff]
    %v135 = vld [vmem:[#allocation5 + $0x108] sm:$0xff]
    %v136 = vld [vmem:[#allocation5 + $0x110] sm:$0xff]
    %v137 = vld [vmem:[#allocation5 + $0x118] sm:$0xff]
    %v138 = vld [vmem:[#allocation5 + $0x120] sm:$0xff]
    %v139 = vld [vmem:[#allocation5 + $0x128] sm:$0xff]
    %v140 = vld [vmem:[#allocation5 + $0x130] sm:$0xff]
    %v141 = vld [vmem:[#allocation5 + $0x138] sm:$0xff]
    %v142 = vld [vmem:[#allocation5 + $0x140] sm:$0xff]
    %v143 = vld [vmem:[#allocation5 + $0x148] sm:$0xff]
    %v144 = vld [vmem:[#allocation5 + $0x150] sm:$0xff]
    %v145 = vld [vmem:[#allocation5 + $0x158] sm:$0xff]
    %v146 = vld [vmem:[#allocation5 + $0x160] sm:$0xff]
    %v147 = vld [vmem:[#allocation5 + $0x168] sm:$0xff]
    %v148 = vld [vmem:[#allocation5 + $0x170] sm:$0xff]
    %v149 = vld [vmem:[#allocation5 + $0x178] sm:$0xff]
    %v150 = vld [vmem:[#allocation5 + $0x180] sm:$0xff]
    %v151 = vld [vmem:[#allocation5 + $0x188] sm:$0xff]
    %v152 = vld [vmem:[#allocation5 + $0x190] sm:$0xff]
    %v153 = vld [vmem:[#allocation5 + $0x198] sm:$0xff]
    %v154 = vld [vmem:[#allocation5 + $0x1a0] sm:$0xff]
    %v155 = vld [vmem:[#allocation5 + $0x1a8] sm:$0xff]
    %v156 = vld [vmem:[#allocation5 + $0x1b0] sm:$0xff]
    %v157 = vld [vmem:[#allocation5 + $0x1b8] sm:$0xff]
    %v158 = vld [vmem:[#allocation5 + $0x1c0] sm:$0xff]
    %v159 = vld [vmem:[#allocation5 + $0x1c8] sm:$0xff]
    %v160 = vld [vmem:[#allocation5 + $0x1d0] sm:$0xff]
    %v161 = vld [vmem:[#allocation5 + $0x1d8] sm:$0xff]
    %v162 = vld [vmem:[#allocation5 + $0x1e0] sm:$0xff]
    %v163 = vld [vmem:[#allocation5 + $0x1e8] sm:$0xff]
    %v164 = vld [vmem:[#allocation5 + $0x1f0] sm:$0xff]
    %v165 = vld [vmem:[#allocation5 + $0x1f8] sm:$0xff]
    %v166 = vld [vmem:[#allocation5 + $0x200] sm:$0xff]
    %v167 = vld [vmem:[#allocation5 + $0x208] sm:$0xff]
    %v168 = vld [vmem:[#allocation5 + $0x210] sm:$0xff]
    %v169 = vld [vmem:[#allocation5 + $0x218] sm:$0xff]
    %v170 = vld [vmem:[#allocation5 + $0x220] sm:$0xff]
    %v171 = vld [vmem:[#allocation5 + $0x228] sm:$0xff]
    %v172 = vld [vmem:[#allocation5 + $0x230] sm:$0xff]
    %v173 = vld [vmem:[#allocation5 + $0x238] sm:$0xff]
    %v174 = vld [vmem:[#allocation5 + $0x240] sm:$0xff]
    %v175 = vld [vmem:[#allocation5 + $0x248] sm:$0xff]
    %v176 = vld [vmem:[#allocation5 + $0x250] sm:$0xff]
    %v177 = vld [vmem:[#allocation5 + $0x258] sm:$0xff]
    %v178 = vld [vmem:[#allocation5 + $0x260] sm:$0xff]
    %v179 = vld [vmem:[#allocation5 + $0x268] sm:$0xff]
    %v180 = vld [vmem:[#allocation5 + $0x270] sm:$0xff]
    %v181 = vld [vmem:[#allocation5 + $0x278] sm:$0xff]
    %v182 = vld [vmem:[#allocation5 + $0x280] sm:$0xff]
    %v183 = vld [vmem:[#allocation5 + $0x288] sm:$0xff]
    %v184 = vld [vmem:[#allocation5 + $0x290] sm:$0xff]
    %v185 = vld [vmem:[#allocation5 + $0x298] sm:$0xff]
    %v186 = vld [vmem:[#allocation5 + $0x2a0] sm:$0xff]
    %v187 = vld [vmem:[#allocation5 + $0x2a8] sm:$0xff]
    %v188 = vld [vmem:[#allocation5 + $0x2b0] sm:$0xff]
    %v189 = vld [vmem:[#allocation5 + $0x2b8] sm:$0xff]
    %v190 = vld [vmem:[#allocation5 + $0x2c0] sm:$0xff]
    %v191 = vld [vmem:[#allocation5 + $0x2c8] sm:$0xff]
    %v192 = vld [vmem:[#allocation5 + $0x2d0] sm:$0xff]
    %v193 = vld [vmem:[#allocation5 + $0x2d8] sm:$0xff]
    %v194 = vld [vmem:[#allocation5 + $0x2e0] sm:$0xff]
    %v195 = vld [vmem:[#allocation5 + $0x2e8] sm:$0xff]
    %v196 = vld [vmem:[#allocation5 + $0x2f0] sm:$0xff]
    %v197 = vld [vmem:[#allocation5 + $0x2f8] sm:$0xff]
    %v198 = vld [vmem:[#allocation5 + $0x300] sm:$0xff]
    %v199 = vld [vmem:[#allocation5 + $0x308] sm:$0xff]
    %v200 = vld [vmem:[#allocation5 + $0x310] sm:$0xff]
    %v201 = vld [vmem:[#allocation5 + $0x318] sm:$0xff]
    %v202 = vld [vmem:[#allocation5 + $0x320] sm:$0xff]
    %v203 = vld [vmem:[#allocation5 + $0x328] sm:$0xff]
    %v204 = vld [vmem:[#allocation5 + $0x330] sm:$0xff]
    %v205 = vld [vmem:[#allocation5 + $0x338] sm:$0xff]
    %v206 = vld [vmem:[#allocation5 + $0x340] sm:$0xff]
    %v207 = vld [vmem:[#allocation5 + $0x348] sm:$0xff]
    %v208 = vld [vmem:[#allocation5 + $0x350] sm:$0xff]
    %v209 = vld [vmem:[#allocation5 + $0x358] sm:$0xff]
    %v210 = vld [vmem:[#allocation5 + $0x360] sm:$0xff]
    %v211 = vld [vmem:[#allocation5 + $0x368] sm:$0xff]
    %v212 = vld [vmem:[#allocation5 + $0x370] sm:$0xff]
    %v213 = vld [vmem:[#allocation5 + $0x378] sm:$0xff]
    %v214 = vld [vmem:[#allocation5 + $0x380] sm:$0xff]
    %v215 = vld [vmem:[#allocation5 + $0x388] sm:$0xff]
    %v216 = vld [vmem:[#allocation5 + $0x390] sm:$0xff]
    %v217 = vld [vmem:[#allocation5 + $0x398] sm:$0xff]
    %v218 = vld [vmem:[#allocation5 + $0x3a0] sm:$0xff]
    %v219 = vld [vmem:[#allocation5 + $0x3a8] sm:$0xff]
    %v220 = vld [vmem:[#allocation5 + $0x3b0] sm:$0xff]
    %v221 = vld [vmem:[#allocation5 + $0x3b8] sm:$0xff]
    %v222 = vld [vmem:[#allocation5 + $0x3c0] sm:$0xff]
    %v223 = vld [vmem:[#allocation5 + $0x3c8] sm:$0xff]
    %v224 = vld [vmem:[#allocation5 + $0x3d0] sm:$0xff]
    %v225 = vld [vmem:[#allocation5 + $0x3d8] sm:$0xff]
    %v226 = vld [vmem:[#allocation5 + $0x3e0] sm:$0xff]
    %v227 = vld [vmem:[#allocation5 + $0x3e8] sm:$0xff]
    %v228 = vld [vmem:[#allocation5 + $0x3f0] sm:$0xff]
    %v229 = vld [vmem:[#allocation5 + $0x3f8] sm:$0xff]
    %v230 = vld [vmem:[#allocation5 + $0x400] sm:$0xff]
    %v231 = vld [vmem:[#allocation5 + $0x408] sm:$0xff]
    %v232 = vld [vmem:[#allocation5 + $0x410] sm:$0xff]
    %v233 = vld [vmem:[#allocation5 + $0x418] sm:$0xff]
    %v234 = vld [vmem:[#allocation5 + $0x420] sm:$0xff]
    %v235 = vld [vmem:[#allocation5 + $0x428] sm:$0xff]
    %v236 = vld [vmem:[#allocation5 + $0x430] sm:$0xff]
    %v237 = vld [vmem:[#allocation5 + $0x438] sm:$0xff]
    %v238 = vld [vmem:[#allocation5 + $0x440] sm:$0xff]
    %v239 = vld [vmem:[#allocation5 + $0x448] sm:$0xff]
    %v240 = vld [vmem:[#allocation5 + $0x450] sm:$0xff]
    %v241 = vld [vmem:[#allocation5 + $0x458] sm:$0xff]
    %v242 = vld [vmem:[#allocation5 + $0x460] sm:$0xff]
    %v243 = vld [vmem:[#allocation5 + $0x468] sm:$0xff]
    %v244 = vld [vmem:[#allocation5 + $0x470] sm:$0xff]
    %v245 = vld [vmem:[#allocation5 + $0x478] sm:$0xff]
    %v246 = vld [vmem:[#allocation5 + $0x480] sm:$0xff]
    %v247 = vld [vmem:[#allocation5 + $0x488] sm:$0xff]
    %v248 = vld [vmem:[#allocation5 + $0x490] sm:$0xff]
    %v249 = vld [vmem:[#allocation5 + $0x498] sm:$0xff]
    %v250 = vld [vmem:[#allocation5 + $0x4a0] sm:$0xff]
    %v251 = vld [vmem:[#allocation5 + $0x4a8] sm:$0xff]
    %v252 = vld [vmem:[#allocation5 + $0x4b0] sm:$0xff]
    %v253 = vld [vmem:[#allocation5 + $0x4b8] sm:$0xff]
    %v254 = vld [vmem:[#allocation5 + $0x4c0] sm:$0xff]
    %v255 = vld [vmem:[#allocation5 + $0x4c8] sm:$0xff]
    %v256 = vld [vmem:[#allocation5 + $0x4d0] sm:$0xff]
    %v257 = vld [vmem:[#allocation5 + $0x4d8] sm:$0xff]
    %v258 = vld [vmem:[#allocation5 + $0x4e0] sm:$0xff]
    %v259 = vld [vmem:[#allocation5 + $0x4e8] sm:$0xff]
    %v260 = vld [vmem:[#allocation5 + $0x4f0] sm:$0xff]
    %v261 = vld [vmem:[#allocation5 + $0x4f8] sm:$0xff]
    %v262 = vld [vmem:[#allocation5 + $0x500] sm:$0xff]
    %v263 = vld [vmem:[#allocation5 + $0x508] sm:$0xff]
    %v264 = vld [vmem:[#allocation5 + $0x510] sm:$0xff]
    %v265 = vld [vmem:[#allocation5 + $0x518] sm:$0xff]
    %v266 = vld [vmem:[#allocation5 + $0x520] sm:$0xff]
    %v267 = vld [vmem:[#allocation5 + $0x528] sm:$0xff]
    %v268 = vld [vmem:[#allocation5 + $0x530] sm:$0xff]
    %v269 = vld [vmem:[#allocation5 + $0x538] sm:$0xff]
    %v270 = vld [vmem:[#allocation5 + $0x540] sm:$0xff]
    %v271 = vld [vmem:[#allocation5 + $0x548] sm:$0xff]
    %v272 = vld [vmem:[#allocation5 + $0x550] sm:$0xff]
    %v273 = vld [vmem:[#allocation5 + $0x558] sm:$0xff]
    %v274 = vld [vmem:[#allocation5 + $0x560] sm:$0xff]
    %v275 = vld [vmem:[#allocation5 + $0x568] sm:$0xff]
    %v276 = vld [vmem:[#allocation5 + $0x570] sm:$0xff]
    %v277 = vld [vmem:[#allocation5 + $0x578] sm:$0xff]
    %v278 = vld [vmem:[#allocation5 + $0x580] sm:$0xff]
    %v279 = vld [vmem:[#allocation5 + $0x588] sm:$0xff]
    %v280 = vld [vmem:[#allocation5 + $0x590] sm:$0xff]
    %v281 = vld [vmem:[#allocation5 + $0x598] sm:$0xff]
    %v282 = vld [vmem:[#allocation5 + $0x5a0] sm:$0xff]
    %v283 = vld [vmem:[#allocation5 + $0x5a8] sm:$0xff]
    %v284 = vld [vmem:[#allocation5 + $0x5b0] sm:$0xff]
    %v285 = vld [vmem:[#allocation5 + $0x5b8] sm:$0xff]
    %v286 = vld [vmem:[#allocation5 + $0x5c0] sm:$0xff]
    %v287 = vld [vmem:[#allocation5 + $0x5c8] sm:$0xff]
    %v288 = vld [vmem:[#allocation5 + $0x5d0] sm:$0xff]
    %v289 = vld [vmem:[#allocation5 + $0x5d8] sm:$0xff]
    %v290 = vld [vmem:[#allocation5 + $0x5e0] sm:$0xff]
    %v291 = vld [vmem:[#allocation5 + $0x5e8] sm:$0xff]
    %v292 = vld [vmem:[#allocation5 + $0x5f0] sm:$0xff]
    %v293 = vld [vmem:[#allocation5 + $0x5f8] sm:$0xff]
    %v294 = vld [vmem:[#allocation5 + $0x600] sm:$0xff]
    %v295 = vld [vmem:[#allocation5 + $0x608] sm:$0xff]
    %v296 = vld [vmem:[#allocation5 + $0x610] sm:$0xff]
    %v297 = vld [vmem:[#allocation5 + $0x618] sm:$0xff]
    %v302 = vunpack.c.l.b16 %v98
    %v303 = vunpack.c.h.b16 %v98
    %v304 = vunpack.c.l.b16 %v99
    %v305 = vunpack.c.h.b16 %v99
    %v306 = vunpack.c.l.b16 %v100
    %v307 = vunpack.c.h.b16 %v100
    %v308 = vunpack.c.l.b16 %v101
    %v309 = vpack.c.b16 %v302, %v302
    %v310 = vpack.c.b16 %v303, %v303
    %v311 = vpack.c.b16 %v304, %v304
    %v312 = vpack.c.b16 %v305, %v305
    %v313 = vpack.c.b16 %v306, %v306
    %v314 = vpack.c.b16 %v307, %v307
    %v315 = vpack.c.b16 %v308, %v308
    %v518 = vunpack.c.l.b16 %v102
    %v519 = vunpack.c.h.b16 %v102
    %v520 = vunpack.c.l.b16 %v103
    %v521 = vunpack.c.h.b16 %v103
    %v522 = vunpack.c.l.b16 %v104
    %v523 = vunpack.c.h.b16 %v104
    %v524 = vunpack.c.l.b16 %v105
    %v525 = vunpack.c.h.b16 %v105
    %v526 = vunpack.c.l.b16 %v106
    %v527 = vunpack.c.h.b16 %v106
    %v528 = vunpack.c.l.b16 %v107
    %v529 = vunpack.c.h.b16 %v107
    %v530 = vunpack.c.l.b16 %v108
    %v531 = vunpack.c.h.b16 %v108
    %v532 = vunpack.c.l.b16 %v109
    %v533 = vunpack.c.h.b16 %v109
    %v534 = vunpack.c.l.b16 %v110
    %v535 = vunpack.c.h.b16 %v110
    %v536 = vunpack.c.l.b16 %v111
    %v537 = vunpack.c.h.b16 %v111
    %v538 = vunpack.c.l.b16 %v112
    %v539 = vunpack.c.h.b16 %v112
    %v540 = vunpack.c.l.b16 %v113
    %v541 = vunpack.c.h.b16 %v113
    %v542 = vunpack.c.l.b16 %v114
    %v543 = vunpack.c.h.b16 %v114
    %v544 = vunpack.c.l.b16 %v115
    %v545 = vunpack.c.h.b16 %v115
    %v546 = vunpack.c.l.b16 %v116
    %v547 = vunpack.c.h.b16 %v116
    %v548 = vunpack.c.l.b16 %v117
    %v549 = vunpack.c.h.b16 %v117
    %v550 = vunpack.c.l.b16 %v118
    %v551 = vunpack.c.h.b16 %v118
    %v552 = vunpack.c.l.b16 %v119
    %v553 = vunpack.c.h.b16 %v119
    %v554 = vunpack.c.l.b16 %v120
    %v555 = vunpack.c.h.b16 %v120
    %v556 = vunpack.c.l.b16 %v121
    %v557 = vunpack.c.h.b16 %v121
    %v558 = vunpack.c.l.b16 %v122
    %v559 = vunpack.c.h.b16 %v122
    %v560 = vunpack.c.l.b16 %v123
    %v561 = vunpack.c.h.b16 %v123
    %v562 = vunpack.c.l.b16 %v124
    %v563 = vunpack.c.h.b16 %v124
    %v564 = vunpack.c.l.b16 %v125
    %v565 = vunpack.c.h.b16 %v125
    %v566 = vunpack.c.l.b16 %v126
    %v567 = vunpack.c.h.b16 %v126
    %v568 = vunpack.c.l.b16 %v127
    %v569 = vunpack.c.h.b16 %v127
    %v570 = vunpack.c.l.b16 %v128
    %v571 = vunpack.c.h.b16 %v128
    %v572 = vunpack.c.l.b16 %v129
    %v573 = vunpack.c.h.b16 %v129
    %v574 = vunpack.c.l.b16 %v130
    %v575 = vunpack.c.h.b16 %v130
    %v576 = vunpack.c.l.b16 %v131
    %v577 = vunpack.c.h.b16 %v131
    %v578 = vunpack.c.l.b16 %v132
    %v579 = vunpack.c.h.b16 %v132
    %v580 = vunpack.c.l.b16 %v133
    %v581 = vunpack.c.h.b16 %v133
    %v582 = vunpack.c.l.b16 %v134
    %v583 = vunpack.c.h.b16 %v134
    %v584 = vunpack.c.l.b16 %v135
    %v585 = vunpack.c.h.b16 %v135
    %v586 = vunpack.c.l.b16 %v136
    %v587 = vunpack.c.h.b16 %v136
    %v588 = vunpack.c.l.b16 %v137
    %v589 = vunpack.c.h.b16 %v137
    %v590 = vunpack.c.l.b16 %v138
    %v591 = vunpack.c.h.b16 %v138
    %v592 = vunpack.c.l.b16 %v139
    %v593 = vunpack.c.h.b16 %v139
    %v594 = vunpack.c.l.b16 %v140
    %v595 = vunpack.c.h.b16 %v140
    %v596 = vunpack.c.l.b16 %v141
    %v597 = vunpack.c.h.b16 %v141
    %v598 = vunpack.c.l.b16 %v142
    %v599 = vunpack.c.h.b16 %v142
    %v600 = vunpack.c.l.b16 %v143
    %v601 = vunpack.c.h.b16 %v143
    %v602 = vunpack.c.l.b16 %v144
    %v603 = vunpack.c.h.b16 %v144
    %v604 = vunpack.c.l.b16 %v145
    %v605 = vunpack.c.h.b16 %v145
    %v606 = vunpack.c.l.b16 %v146
    %v607 = vunpack.c.h.b16 %v146
    %v608 = vunpack.c.l.b16 %v147
    %v609 = vunpack.c.h.b16 %v147
    %v610 = vunpack.c.l.b16 %v148
    %v611 = vunpack.c.h.b16 %v148
    %v612 = vunpack.c.l.b16 %v149
    %v613 = vunpack.c.h.b16 %v149
    %v614 = vunpack.c.l.b16 %v150
    %v615 = vunpack.c.h.b16 %v150
    %v616 = vunpack.c.l.b16 %v151
    %v617 = vunpack.c.h.b16 %v151
    %v618 = vunpack.c.l.b16 %v152
    %v619 = vunpack.c.h.b16 %v152
    %v620 = vunpack.c.l.b16 %v153
    %v621 = vunpack.c.h.b16 %v153
    %v622 = vunpack.c.l.b16 %v154
    %v623 = vunpack.c.h.b16 %v154
    %v624 = vunpack.c.l.b16 %v155
    %v625 = vunpack.c.h.b16 %v155
    %v626 = vunpack.c.l.b16 %v156
    %v627 = vunpack.c.h.b16 %v156
    %v628 = vunpack.c.l.b16 %v157
    %v629 = vunpack.c.h.b16 %v157
    %v630 = vunpack.c.l.b16 %v158
    %v631 = vunpack.c.h.b16 %v158
    %v632 = vunpack.c.l.b16 %v159
    %v633 = vunpack.c.h.b16 %v159
    %v634 = vunpack.c.l.b16 %v160
    %v635 = vunpack.c.h.b16 %v160
    %v636 = vunpack.c.l.b16 %v161
    %v637 = vunpack.c.h.b16 %v161
    %v638 = vunpack.c.l.b16 %v162
    %v639 = vunpack.c.h.b16 %v162
    %v640 = vunpack.c.l.b16 %v163
    %v641 = vunpack.c.h.b16 %v163
    %v642 = vunpack.c.l.b16 %v164
    %v643 = vunpack.c.h.b16 %v164
    %v644 = vunpack.c.l.b16 %v165
    %v645 = vunpack.c.h.b16 %v165
    %v646 = vunpack.c.l.b16 %v166
    %v647 = vunpack.c.h.b16 %v166
    %v648 = vunpack.c.l.b16 %v167
    %v649 = vunpack.c.h.b16 %v167
    %v650 = vunpack.c.l.b16 %v168
    %v651 = vunpack.c.h.b16 %v168
    %v652 = vunpack.c.l.b16 %v169
    %v653 = vunpack.c.h.b16 %v169
    %v654 = vunpack.c.l.b16 %v170
    %v655 = vunpack.c.h.b16 %v170
    %v656 = vunpack.c.l.b16 %v171
    %v657 = vunpack.c.h.b16 %v171
    %v658 = vunpack.c.l.b16 %v172
    %v659 = vunpack.c.h.b16 %v172
    %v660 = vunpack.c.l.b16 %v173
    %v661 = vunpack.c.h.b16 %v173
    %v662 = vunpack.c.l.b16 %v174
    %v663 = vunpack.c.h.b16 %v174
    %v664 = vunpack.c.l.b16 %v175
    %v665 = vunpack.c.h.b16 %v175
    %v666 = vunpack.c.l.b16 %v176
    %v667 = vunpack.c.h.b16 %v176
    %v668 = vunpack.c.l.b16 %v177
    %v669 = vunpack.c.h.b16 %v177
    %v670 = vunpack.c.l.b16 %v178
    %v671 = vunpack.c.h.b16 %v178
    %v672 = vunpack.c.l.b16 %v179
    %v673 = vunpack.c.h.b16 %v179
    %v674 = vunpack.c.l.b16 %v180
    %v675 = vunpack.c.h.b16 %v180
    %v676 = vunpack.c.l.b16 %v181
    %v677 = vunpack.c.h.b16 %v181
    %v678 = vunpack.c.l.b16 %v182
    %v679 = vunpack.c.h.b16 %v182
    %v680 = vunpack.c.l.b16 %v183
    %v681 = vunpack.c.h.b16 %v183
    %v682 = vunpack.c.l.b16 %v184
    %v683 = vunpack.c.h.b16 %v184
    %v684 = vunpack.c.l.b16 %v185
    %v685 = vunpack.c.h.b16 %v185
    %v686 = vunpack.c.l.b16 %v186
    %v687 = vunpack.c.h.b16 %v186
    %v688 = vunpack.c.l.b16 %v187
    %v689 = vunpack.c.h.b16 %v187
    %v690 = vunpack.c.l.b16 %v188
    %v691 = vunpack.c.h.b16 %v188
    %v692 = vunpack.c.l.b16 %v189
    %v693 = vunpack.c.h.b16 %v189
    %v694 = vunpack.c.l.b16 %v190
    %v695 = vunpack.c.h.b16 %v190
    %v696 = vunpack.c.l.b16 %v191
    %v697 = vunpack.c.h.b16 %v191
    %v698 = vunpack.c.l.b16 %v192
    %v699 = vunpack.c.h.b16 %v192
    %v700 = vunpack.c.l.b16 %v193
    %v701 = vunpack.c.h.b16 %v193
    %v702 = vunpack.c.l.b16 %v194
    %v703 = vunpack.c.h.b16 %v194
    %v704 = vunpack.c.l.b16 %v195
    %v705 = vunpack.c.h.b16 %v195
    %v706 = vunpack.c.l.b16 %v196
    %v707 = vunpack.c.h.b16 %v196
    %v708 = vunpack.c.l.b16 %v197
    %v709 = vunpack.c.h.b16 %v197
    %v710 = vunpack.c.l.b16 %v198
    %v711 = vunpack.c.h.b16 %v198
    %v712 = vunpack.c.l.b16 %v199
    %v713 = vunpack.c.h.b16 %v199
    %v714 = vunpack.c.l.b16 %v200
    %v715 = vunpack.c.h.b16 %v200
    %v716 = vunpack.c.l.b16 %v201
    %v717 = vunpack.c.h.b16 %v201
    %v718 = vunpack.c.l.b16 %v202
    %v719 = vunpack.c.h.b16 %v202
    %v720 = vunpack.c.l.b16 %v203
    %v721 = vunpack.c.h.b16 %v203
    %v722 = vunpack.c.l.b16 %v204
    %v723 = vunpack.c.h.b16 %v204
    %v724 = vunpack.c.l.b16 %v205
    %v725 = vunpack.c.h.b16 %v205
    %v726 = vunpack.c.l.b16 %v206
    %v727 = vunpack.c.h.b16 %v206
    %v728 = vunpack.c.l.b16 %v207
    %v729 = vunpack.c.h.b16 %v207
    %v730 = vunpack.c.l.b16 %v208
    %v731 = vunpack.c.h.b16 %v208
    %v732 = vunpack.c.l.b16 %v209
    %v733 = vunpack.c.h.b16 %v209
    %v734 = vunpack.c.l.b16 %v210
    %v735 = vunpack.c.h.b16 %v210
    %v736 = vunpack.c.l.b16 %v211
    %v737 = vunpack.c.h.b16 %v211
    %v738 = vunpack.c.l.b16 %v212
    %v739 = vunpack.c.h.b16 %v212
    %v740 = vunpack.c.l.b16 %v213
    %v741 = vunpack.c.h.b16 %v213
    %v742 = vunpack.c.l.b16 %v214
    %v743 = vunpack.c.h.b16 %v214
    %v744 = vunpack.c.l.b16 %v215
    %v745 = vunpack.c.h.b16 %v215
    %v746 = vunpack.c.l.b16 %v216
    %v747 = vunpack.c.h.b16 %v216
    %v748 = vunpack.c.l.b16 %v217
    %v749 = vunpack.c.h.b16 %v217
    %v750 = vunpack.c.l.b16 %v218
    %v751 = vunpack.c.h.b16 %v218
    %v752 = vunpack.c.l.b16 %v219
    %v753 = vunpack.c.h.b16 %v219
    %v754 = vunpack.c.l.b16 %v220
    %v755 = vunpack.c.h.b16 %v220
    %v756 = vunpack.c.l.b16 %v221
    %v757 = vunpack.c.h.b16 %v221
    %v758 = vunpack.c.l.b16 %v222
    %v759 = vunpack.c.h.b16 %v222
    %v760 = vunpack.c.l.b16 %v223
    %v761 = vunpack.c.h.b16 %v223
    %v762 = vunpack.c.l.b16 %v224
    %v763 = vunpack.c.h.b16 %v224
    %v764 = vunpack.c.l.b16 %v225
    %v765 = vunpack.c.h.b16 %v225
    %v766 = vunpack.c.l.b16 %v226
    %v767 = vunpack.c.h.b16 %v226
    %v768 = vunpack.c.l.b16 %v227
    %v769 = vunpack.c.h.b16 %v227
    %v770 = vunpack.c.l.b16 %v228
    %v771 = vunpack.c.h.b16 %v228
    %v772 = vunpack.c.l.b16 %v229
    %v773 = vunpack.c.h.b16 %v229
    %v774 = vunpack.c.l.b16 %v230
    %v775 = vunpack.c.h.b16 %v230
    %v776 = vunpack.c.l.b16 %v231
    %v777 = vunpack.c.h.b16 %v231
    %v778 = vunpack.c.l.b16 %v232
    %v779 = vunpack.c.h.b16 %v232
    %v780 = vunpack.c.l.b16 %v233
    %v781 = vunpack.c.h.b16 %v233
    %v782 = vunpack.c.l.b16 %v234
    %v783 = vunpack.c.h.b16 %v234
    %v784 = vunpack.c.l.b16 %v235
    %v785 = vunpack.c.h.b16 %v235
    %v786 = vunpack.c.l.b16 %v236
    %v787 = vunpack.c.h.b16 %v236
    %v788 = vunpack.c.l.b16 %v237
    %v789 = vunpack.c.h.b16 %v237
    %v790 = vunpack.c.l.b16 %v238
    %v791 = vunpack.c.h.b16 %v238
    %v792 = vunpack.c.l.b16 %v239
    %v793 = vunpack.c.h.b16 %v239
    %v794 = vunpack.c.l.b16 %v240
    %v795 = vunpack.c.h.b16 %v240
    %v796 = vunpack.c.l.b16 %v241
    %v797 = vunpack.c.h.b16 %v241
    %v798 = vunpack.c.l.b16 %v242
    %v799 = vunpack.c.h.b16 %v242
    %v800 = vunpack.c.l.b16 %v243
    %v801 = vunpack.c.h.b16 %v243
    %v802 = vunpack.c.l.b16 %v244
    %v803 = vunpack.c.h.b16 %v244
    %v804 = vunpack.c.l.b16 %v245
    %v805 = vunpack.c.h.b16 %v245
    %v806 = vunpack.c.l.b16 %v246
    %v807 = vunpack.c.h.b16 %v246
    %v808 = vunpack.c.l.b16 %v247
    %v809 = vunpack.c.h.b16 %v247
    %v810 = vunpack.c.l.b16 %v248
    %v811 = vunpack.c.h.b16 %v248
    %v812 = vunpack.c.l.b16 %v249
    %v813 = vunpack.c.h.b16 %v249
    %v814 = vunpack.c.l.b16 %v250
    %v815 = vunpack.c.h.b16 %v250
    %v816 = vunpack.c.l.b16 %v251
    %v817 = vunpack.c.h.b16 %v251
    %v818 = vunpack.c.l.b16 %v252
    %v819 = vunpack.c.h.b16 %v252
    %v820 = vunpack.c.l.b16 %v253
    %v821 = vunpack.c.h.b16 %v253
    %v822 = vunpack.c.l.b16 %v254
    %v823 = vunpack.c.h.b16 %v254
    %v824 = vunpack.c.l.b16 %v255
    %v825 = vunpack.c.h.b16 %v255
    %v826 = vunpack.c.l.b16 %v256
    %v827 = vunpack.c.h.b16 %v256
    %v828 = vunpack.c.l.b16 %v257
    %v829 = vunpack.c.h.b16 %v257
    %v830 = vunpack.c.l.b16 %v258
    %v831 = vunpack.c.h.b16 %v258
    %v832 = vunpack.c.l.b16 %v259
    %v833 = vunpack.c.h.b16 %v259
    %v834 = vunpack.c.l.b16 %v260
    %v835 = vunpack.c.h.b16 %v260
    %v836 = vunpack.c.l.b16 %v261
    %v837 = vunpack.c.h.b16 %v261
    %v838 = vunpack.c.l.b16 %v262
    %v839 = vunpack.c.h.b16 %v262
    %v840 = vunpack.c.l.b16 %v263
    %v841 = vunpack.c.h.b16 %v263
    %v842 = vunpack.c.l.b16 %v264
    %v843 = vunpack.c.h.b16 %v264
    %v844 = vunpack.c.l.b16 %v265
    %v845 = vunpack.c.h.b16 %v265
    %v846 = vunpack.c.l.b16 %v266
    %v847 = vunpack.c.h.b16 %v266
    %v848 = vunpack.c.l.b16 %v267
    %v849 = vunpack.c.h.b16 %v267
    %v850 = vunpack.c.l.b16 %v268
    %v851 = vunpack.c.h.b16 %v268
    %v852 = vunpack.c.l.b16 %v269
    %v853 = vunpack.c.h.b16 %v269
    %v854 = vunpack.c.l.b16 %v270
    %v855 = vunpack.c.h.b16 %v270
    %v856 = vunpack.c.l.b16 %v271
    %v857 = vunpack.c.h.b16 %v271
    %v858 = vunpack.c.l.b16 %v272
    %v859 = vunpack.c.h.b16 %v272
    %v860 = vunpack.c.l.b16 %v273
    %v861 = vunpack.c.h.b16 %v273
    %v862 = vunpack.c.l.b16 %v274
    %v863 = vunpack.c.h.b16 %v274
    %v864 = vunpack.c.l.b16 %v275
    %v865 = vunpack.c.h.b16 %v275
    %v866 = vunpack.c.l.b16 %v276
    %v867 = vunpack.c.h.b16 %v276
    %v868 = vunpack.c.l.b16 %v277
    %v869 = vunpack.c.h.b16 %v277
    %v870 = vunpack.c.l.b16 %v278
    %v871 = vunpack.c.h.b16 %v278
    %v872 = vunpack.c.l.b16 %v279
    %v873 = vunpack.c.h.b16 %v279
    %v874 = vunpack.c.l.b16 %v280
    %v875 = vunpack.c.h.b16 %v280
    %v876 = vunpack.c.l.b16 %v281
    %v877 = vunpack.c.h.b16 %v281
    %v878 = vunpack.c.l.b16 %v282
    %v879 = vunpack.c.h.b16 %v282
    %v880 = vunpack.c.l.b16 %v283
    %v881 = vunpack.c.h.b16 %v283
    %v882 = vunpack.c.l.b16 %v284
    %v883 = vunpack.c.h.b16 %v284
    %v884 = vunpack.c.l.b16 %v285
    %v885 = vunpack.c.h.b16 %v285
    %v886 = vunpack.c.l.b16 %v286
    %v887 = vunpack.c.h.b16 %v286
    %v888 = vunpack.c.l.b16 %v287
    %v889 = vunpack.c.h.b16 %v287
    %v890 = vunpack.c.l.b16 %v288
    %v891 = vunpack.c.h.b16 %v288
    %v892 = vunpack.c.l.b16 %v289
    %v893 = vunpack.c.h.b16 %v289
    %v894 = vunpack.c.l.b16 %v290
    %v895 = vunpack.c.h.b16 %v290
    %v896 = vunpack.c.l.b16 %v291
    %v897 = vunpack.c.h.b16 %v291
    %v898 = vunpack.c.l.b16 %v292
    %v899 = vunpack.c.h.b16 %v292
    %v900 = vunpack.c.l.b16 %v293
    %v901 = vunpack.c.h.b16 %v293
    %v902 = vunpack.c.l.b16 %v294
    %v903 = vunpack.c.h.b16 %v294
    %v904 = vunpack.c.l.b16 %v295
    %v905 = vunpack.c.h.b16 %v295
    %v906 = vunpack.c.l.b16 %v296
    %v907 = vunpack.c.h.b16 %v296
    %v908 = vunpack.c.l.b16 %v297
    %v909 = vunpack.c.h.b16 %v297
    %v910 = vpack.c.b16 %v522, %v518
    %v911 = vpack.c.b16 %v523, %v519
    %v912 = vpack.c.b16 %v524, %v520
    %v913 = vpack.c.b16 %v525, %v521
    %v914 = vpack.c.b16 %v530, %v526
    %v915 = vpack.c.b16 %v531, %v527
    %v916 = vpack.c.b16 %v532, %v528
    %v917 = vpack.c.b16 %v533, %v529
    %v918 = vpack.c.b16 %v538, %v534
    %v919 = vpack.c.b16 %v539, %v535
    %v920 = vpack.c.b16 %v540, %v536
    %v921 = vpack.c.b16 %v541, %v537
    %v922 = vpack.c.b16 %v546, %v542
    %v923 = vpack.c.b16 %v547, %v543
    %v924 = vpack.c.b16 %v548, %v544
    %v925 = vpack.c.b16 %v549, %v545
    %v926 = vpack.c.b16 %v554, %v550
    %v927 = vpack.c.b16 %v555, %v551
    %v928 = vpack.c.b16 %v556, %v552
    %v929 = vpack.c.b16 %v557, %v553
    %v930 = vpack.c.b16 %v562, %v558
    %v931 = vpack.c.b16 %v563, %v559
    %v932 = vpack.c.b16 %v564, %v560
    %v933 = vpack.c.b16 %v565, %v561
    %v934 = vpack.c.b16 %v570, %v566
    %v935 = vpack.c.b16 %v571, %v567
    %v936 = vpack.c.b16 %v572, %v568
    %v937 = vpack.c.b16 %v573, %v569
    %v938 = vpack.c.b16 %v578, %v574
    %v939 = vpack.c.b16 %v579, %v575
    %v940 = vpack.c.b16 %v580, %v576
    %v941 = vpack.c.b16 %v581, %v577
    %v942 = vpack.c.b16 %v586, %v582
    %v943 = vpack.c.b16 %v587, %v583
    %v944 = vpack.c.b16 %v588, %v584
    %v945 = vpack.c.b16 %v589, %v585
    %v946 = vpack.c.b16 %v594, %v590
    %v947 = vpack.c.b16 %v595, %v591
    %v948 = vpack.c.b16 %v596, %v592
    %v949 = vpack.c.b16 %v597, %v593
    %v950 = vpack.c.b16 %v602, %v598
    %v951 = vpack.c.b16 %v603, %v599
    %v952 = vpack.c.b16 %v604, %v600
    %v953 = vpack.c.b16 %v605, %v601
    %v954 = vpack.c.b16 %v610, %v606
    %v955 = vpack.c.b16 %v611, %v607
    %v956 = vpack.c.b16 %v612, %v608
    %v957 = vpack.c.b16 %v613, %v609
    %v958 = vpack.c.b16 %v618, %v614
    %v959 = vpack.c.b16 %v619, %v615
    %v960 = vpack.c.b16 %v620, %v616
    %v961 = vpack.c.b16 %v621, %v617
    %v962 = vpack.c.b16 %v626, %v622
    %v963 = vpack.c.b16 %v627, %v623
    %v964 = vpack.c.b16 %v628, %v624
    %v965 = vpack.c.b16 %v629, %v625
    %v966 = vpack.c.b16 %v634, %v630
    %v967 = vpack.c.b16 %v635, %v631
    %v968 = vpack.c.b16 %v636, %v632
    %v969 = vpack.c.b16 %v637, %v633
    %v970 = vpack.c.b16 %v642, %v638
    %v971 = vpack.c.b16 %v643, %v639
    %v972 = vpack.c.b16 %v644, %v640
    %v973 = vpack.c.b16 %v645, %v641
    %v974 = vpack.c.b16 %v650, %v646
    %v975 = vpack.c.b16 %v651, %v647
    %v976 = vpack.c.b16 %v652, %v648
    %v977 = vpack.c.b16 %v653, %v649
    %v978 = vpack.c.b16 %v658, %v654
    %v979 = vpack.c.b16 %v659, %v655
    %v980 = vpack.c.b16 %v660, %v656
    %v981 = vpack.c.b16 %v661, %v657
    %v982 = vpack.c.b16 %v666, %v662
    %v983 = vpack.c.b16 %v667, %v663
    %v984 = vpack.c.b16 %v668, %v664
    %v985 = vpack.c.b16 %v669, %v665
    %v986 = vpack.c.b16 %v674, %v670
    %v987 = vpack.c.b16 %v675, %v671
    %v988 = vpack.c.b16 %v676, %v672
    %v989 = vpack.c.b16 %v677, %v673
    %v990 = vpack.c.b16 %v682, %v678
    %v991 = vpack.c.b16 %v683, %v679
    %v992 = vpack.c.b16 %v684, %v680
    %v993 = vpack.c.b16 %v685, %v681
    %v994 = vpack.c.b16 %v690, %v686
    %v995 = vpack.c.b16 %v691, %v687
    %v996 = vpack.c.b16 %v692, %v688
    %v997 = vpack.c.b16 %v693, %v689
    %v998 = vpack.c.b16 %v698, %v694
    %v999 = vpack.c.b16 %v699, %v695
    %v1000 = vpack.c.b16 %v700, %v696
    %v1001 = vpack.c.b16 %v701, %v697
    %v1002 = vpack.c.b16 %v706, %v702
    %v1003 = vpack.c.b16 %v707, %v703
    %v1004 = vpack.c.b16 %v708, %v704
    %v1005 = vpack.c.b16 %v709, %v705
    %v1006 = vpack.c.b16 %v714, %v710
    %v1007 = vpack.c.b16 %v715, %v711
    %v1008 = vpack.c.b16 %v716, %v712
    %v1009 = vpack.c.b16 %v717, %v713
    %v1010 = vpack.c.b16 %v722, %v718
    %v1011 = vpack.c.b16 %v723, %v719
    %v1012 = vpack.c.b16 %v724, %v720
    %v1013 = vpack.c.b16 %v725, %v721
    %v1014 = vpack.c.b16 %v730, %v726
    %v1015 = vpack.c.b16 %v731, %v727
    %v1016 = vpack.c.b16 %v732, %v728
    %v1017 = vpack.c.b16 %v733, %v729
    %v1018 = vpack.c.b16 %v738, %v734
    %v1019 = vpack.c.b16 %v739, %v735
    %v1020 = vpack.c.b16 %v740, %v736
    %v1021 = vpack.c.b16 %v741, %v737
    %v1022 = vpack.c.b16 %v746, %v742
    %v1023 = vpack.c.b16 %v747, %v743
    %v1024 = vpack.c.b16 %v748, %v744
    %v1025 = vpack.c.b16 %v749, %v745
    %v1026 = vpack.c.b16 %v754, %v750
    %v1027 = vpack.c.b16 %v755, %v751
    %v1028 = vpack.c.b16 %v756, %v752
    %v1029 = vpack.c.b16 %v757, %v753
    %v1030 = vpack.c.b16 %v762, %v758
    %v1031 = vpack.c.b16 %v763, %v759
    %v1032 = vpack.c.b16 %v764, %v760
    %v1033 = vpack.c.b16 %v765, %v761
    %v1034 = vpack.c.b16 %v770, %v766
    %v1035 = vpack.c.b16 %v771, %v767
    %v1036 = vpack.c.b16 %v772, %v768
    %v1037 = vpack.c.b16 %v773, %v769
    %v1038 = vpack.c.b16 %v778, %v774
    %v1039 = vpack.c.b16 %v779, %v775
    %v1040 = vpack.c.b16 %v780, %v776
    %v1041 = vpack.c.b16 %v781, %v777
    %v1042 = vpack.c.b16 %v786, %v782
    %v1043 = vpack.c.b16 %v787, %v783
    %v1044 = vpack.c.b16 %v788, %v784
    %v1045 = vpack.c.b16 %v789, %v785
    %v1046 = vpack.c.b16 %v794, %v790
    %v1047 = vpack.c.b16 %v795, %v791
    %v1048 = vpack.c.b16 %v796, %v792
    %v1049 = vpack.c.b16 %v797, %v793
    %v1050 = vpack.c.b16 %v802, %v798
    %v1051 = vpack.c.b16 %v803, %v799
    %v1052 = vpack.c.b16 %v804, %v800
    %v1053 = vpack.c.b16 %v805, %v801
    %v1054 = vpack.c.b16 %v810, %v806
    %v1055 = vpack.c.b16 %v811, %v807
    %v1056 = vpack.c.b16 %v812, %v808
    %v1057 = vpack.c.b16 %v813, %v809
    %v1058 = vpack.c.b16 %v818, %v814
    %v1059 = vpack.c.b16 %v819, %v815
    %v1060 = vpack.c.b16 %v820, %v816
    %v1061 = vpack.c.b16 %v821, %v817
    %v1062 = vpack.c.b16 %v826, %v822
    %v1063 = vpack.c.b16 %v827, %v823
    %v1064 = vpack.c.b16 %v828, %v824
    %v1065 = vpack.c.b16 %v829, %v825
    %v1066 = vpack.c.b16 %v834, %v830
    %v1067 = vpack.c.b16 %v835, %v831
    %v1068 = vpack.c.b16 %v836, %v832
    %v1069 = vpack.c.b16 %v837, %v833
    %v1070 = vpack.c.b16 %v842, %v838
    %v1071 = vpack.c.b16 %v843, %v839
    %v1072 = vpack.c.b16 %v844, %v840
    %v1073 = vpack.c.b16 %v845, %v841
    %v1074 = vpack.c.b16 %v850, %v846
    %v1075 = vpack.c.b16 %v851, %v847
    %v1076 = vpack.c.b16 %v852, %v848
    %v1077 = vpack.c.b16 %v853, %v849
    %v1078 = vpack.c.b16 %v858, %v854
    %v1079 = vpack.c.b16 %v859, %v855
    %v1080 = vpack.c.b16 %v860, %v856
    %v1081 = vpack.c.b16 %v861, %v857
    %v1082 = vpack.c.b16 %v866, %v862
    %v1083 = vpack.c.b16 %v867, %v863
    %v1084 = vpack.c.b16 %v868, %v864
    %v1085 = vpack.c.b16 %v869, %v865
    %v1086 = vpack.c.b16 %v874, %v870
    %v1087 = vpack.c.b16 %v875, %v871
    %v1088 = vpack.c.b16 %v876, %v872
    %v1089 = vpack.c.b16 %v877, %v873
    %v1090 = vpack.c.b16 %v882, %v878
    %v1091 = vpack.c.b16 %v883, %v879
    %v1092 = vpack.c.b16 %v884, %v880
    %v1093 = vpack.c.b16 %v885, %v881
    %v1094 = vpack.c.b16 %v890, %v886
    %v1095 = vpack.c.b16 %v891, %v887
    %v1096 = vpack.c.b16 %v892, %v888
    %v1097 = vpack.c.b16 %v893, %v889
    %v1098 = vpack.c.b16 %v898, %v894
    %v1099 = vpack.c.b16 %v899, %v895
    %v1100 = vpack.c.b16 %v900, %v896
    %v1101 = vpack.c.b16 %v901, %v897
    %v1102 = vpack.c.b16 %v906, %v902
    %v1103 = vpack.c.b16 %v907, %v903
    %v1104 = vpack.c.b16 %v908, %v904
    %v1105 = vpack.c.b16 %v909, %v905
    %vm1302 = vcmask 130048
    %v1304 = vsel %vm1302, %v315, 0
    %1306 = vmatprep.subr.bf16.mxu0 %v939
    %1307 = vmatpush1.bf16.msra.mxu0 %v938
    %1308 = vmatprep.subr.bf16.mxu0 %v935
    %1309 = vmatpush1.bf16.msra.mxu0 %v934
    %1310 = vmatprep.subr.bf16.mxu0 %v931
    %1311 = vmatpush1.bf16.msra.mxu0 %v930
    %1312 = vmatprep.subr.bf16.mxu0 %v927
    %1313 = vmatpush1.bf16.msra.mxu0 %v926
    %1314 = vmatprep.subr.bf16.mxu0 %v923
    %1315 = vmatpush1.bf16.msra.mxu0 %v922
    %1316 = vmatprep.subr.bf16.mxu0 %v919
    %1317 = vmatpush1.bf16.msra.mxu0 %v918
    %1318 = vmatprep.subr.bf16.mxu0 %v915
    %1319 = vmatpush1.bf16.msra.mxu0 %v914
    %1320 = vmatprep.subr.bf16.mxu0 %v911
    %1321 = vmatpush1.bf16.msra.mxu0 %v910
    %1322 = vmatprep.subr.bf16.mxu0 %v971
    %1323 = vmatpush2.bf16.msra.mxu0 %v970
    %1324 = vmatprep.subr.bf16.mxu0 %v967
    %1325 = vmatpush2.bf16.msra.mxu0 %v966
    %1326 = vmatprep.subr.bf16.mxu0 %v963
    %1327 = vmatpush2.bf16.msra.mxu0 %v962
    %1328 = vmatprep.subr.bf16.mxu0 %v959
    %1329 = vmatpush2.bf16.msra.mxu0 %v958
    %1330 = vmatprep.subr.bf16.mxu0 %v955
    %1331 = vmatpush2.bf16.msra.mxu0 %v954
    %1332 = vmatprep.subr.bf16.mxu0 %v951
    %1333 = vmatpush2.bf16.msra.mxu0 %v950
    %1334 = vmatprep.subr.bf16.mxu0 %v947
    %1335 = vmatpush2.bf16.msra.mxu0 %v946
    %1336 = vmatprep.subr.bf16.mxu0 %v943
    %1337 = vmatpush2.bf16.msra.mxu0 %v942
    %1338 = vmatprep.mubr.bf16.mxu0 %v310
    %1339 = vmatmul.mubr.bf16.gmra.mxu0 %v309
    %v1340 = vpop.f32.mrf.mxu0
    %v1341 = vadd.f32 0.0, %v1340
    %v1342 = vpop.f32.mrf.mxu0
    %v1343 = vadd.f32 0.0, %v1342
    %v1344 = vpop.f32.mrf.mxu0
    %v1345 = vpop.f32.mrf.mxu0
    %1346 = vdwg.mxu0
    %1347 = vmatprep.subr.bf16.mxu0 %v1003
    %1348 = vmatpush1.bf16.msra.mxu0 %v1002
    %1349 = vmatprep.subr.bf16.mxu0 %v999
    %1350 = vmatpush1.bf16.msra.mxu0 %v998
    %1351 = vmatprep.subr.bf16.mxu0 %v995
    %1352 = vmatpush1.bf16.msra.mxu0 %v994
    %1353 = vmatprep.subr.bf16.mxu0 %v991
    %1354 = vmatpush1.bf16.msra.mxu0 %v990
    %1355 = vmatprep.subr.bf16.mxu0 %v987
    %1356 = vmatpush1.bf16.msra.mxu0 %v986
    %1357 = vmatprep.subr.bf16.mxu0 %v983
    %1358 = vmatpush1.bf16.msra.mxu0 %v982
    %1359 = vmatprep.subr.bf16.mxu0 %v979
    %1360 = vmatpush1.bf16.msra.mxu0 %v978
    %1361 = vmatprep.subr.bf16.mxu0 %v975
    %1362 = vmatpush1.bf16.msra.mxu0 %v974
    %1363 = vmatprep.subr.bf16.mxu0 %v1035
    %1364 = vmatpush2.bf16.msra.mxu0 %v1034
    %1365 = vmatprep.subr.bf16.mxu0 %v1031
    %1366 = vmatpush2.bf16.msra.mxu0 %v1030
    %1367 = vmatprep.subr.bf16.mxu0 %v1027
    %1368 = vmatpush2.bf16.msra.mxu0 %v1026
    %1369 = vmatprep.subr.bf16.mxu0 %v1023
    %1370 = vmatpush2.bf16.msra.mxu0 %v1022
    %1371 = vmatprep.subr.bf16.mxu0 %v1019
    %1372 = vmatpush2.bf16.msra.mxu0 %v1018
    %1373 = vmatprep.subr.bf16.mxu0 %v1015
    %1374 = vmatpush2.bf16.msra.mxu0 %v1014
    %1375 = vmatprep.subr.bf16.mxu0 %v1011
    %1376 = vmatpush2.bf16.msra.mxu0 %v1010
    %1377 = vmatprep.subr.bf16.mxu0 %v1007
    %1378 = vmatpush2.bf16.msra.mxu0 %v1006
    %1379 = vmatprep.mubr.bf16.mxu0 %v312
    %1380 = vmatmul.mubr.bf16.gmra.mxu0 %v311
    %v1381 = vpop.f32.mrf.mxu0
    %v1382 = vadd.f32 %v1341, %v1381
    %v1383 = vpop.f32.mrf.mxu0
    %v1384 = vadd.f32 %v1343, %v1383
    %v1385 = vpop.f32.mrf.mxu0
    %v1386 = vpop.f32.mrf.mxu0
    %1387 = vdwg.mxu0
    %1388 = vmatprep.subr.bf16.mxu0 %v1067
    %1389 = vmatpush1.bf16.msra.mxu0 %v1066
    %1390 = vmatprep.subr.bf16.mxu0 %v1063
    %1391 = vmatpush1.bf16.msra.mxu0 %v1062
    %1392 = vmatprep.subr.bf16.mxu0 %v1059
    %1393 = vmatpush1.bf16.msra.mxu0 %v1058
    %1394 = vmatprep.subr.bf16.mxu0 %v1055
    %1395 = vmatpush1.bf16.msra.mxu0 %v1054
    %1396 = vmatprep.subr.bf16.mxu0 %v1051
    %1397 = vmatpush1.bf16.msra.mxu0 %v1050
    %1398 = vmatprep.subr.bf16.mxu0 %v1047
    %1399 = vmatpush1.bf16.msra.mxu0 %v1046
    %1400 = vmatprep.subr.bf16.mxu0 %v1043
    %1401 = vmatpush1.bf16.msra.mxu0 %v1042
    %1402 = vmatprep.subr.bf16.mxu0 %v1039
    %1403 = vmatpush1.bf16.msra.mxu0 %v1038
    %1404 = vmatprep.subr.bf16.mxu0 %v1099
    %1405 = vmatpush2.bf16.msra.mxu0 %v1098
    %1406 = vmatprep.subr.bf16.mxu0 %v1095
    %1407 = vmatpush2.bf16.msra.mxu0 %v1094
    %1408 = vmatprep.subr.bf16.mxu0 %v1091
    %1409 = vmatpush2.bf16.msra.mxu0 %v1090
    %1410 = vmatprep.subr.bf16.mxu0 %v1087
    %1411 = vmatpush2.bf16.msra.mxu0 %v1086
    %1412 = vmatprep.subr.bf16.mxu0 %v1083
    %1413 = vmatpush2.bf16.msra.mxu0 %v1082
    %1414 = vmatprep.subr.bf16.mxu0 %v1079
    %1415 = vmatpush2.bf16.msra.mxu0 %v1078
    %1416 = vmatprep.subr.bf16.mxu0 %v1075
    %1417 = vmatpush2.bf16.msra.mxu0 %v1074
    %1418 = vmatprep.subr.bf16.mxu0 %v1071
    %1419 = vmatpush2.bf16.msra.mxu0 %v1070
    %1420 = vmatprep.mubr.bf16.mxu0 %v314
    %1421 = vmatmul.mubr.bf16.gmra.mxu0 %v313
    %v1422 = vpop.f32.mrf.mxu0
    %v1423 = vadd.f32 %v1382, %v1422
    %v1424 = vpop.f32.mrf.mxu0
    %v1425 = vadd.f32 %v1384, %v1424
    %v1426 = vpop.f32.mrf.mxu0
    %v1427 = vpop.f32.mrf.mxu0
    %1428 = vdwg.mxu0
    %1429 = vmatprep.subr.bf16.mxu0 0
    %1430 = vmatpush1.bf16.msra.mxu0 0
    %1431 = vmatprep.subr.bf16.mxu0 0
    %1432 = vmatpush1.bf16.msra.mxu0 0
    %1433 = vmatprep.subr.bf16.mxu0 0
    %1434 = vmatpush1.bf16.msra.mxu0 0
    %1435 = vmatprep.subr.bf16.mxu0 0
    %1436 = vmatpush1.bf16.msra.mxu0 0
    %1437 = vmatprep.subr.bf16.mxu0 0
    %1438 = vmatpush1.bf16.msra.mxu0 0
    %1439 = vmatprep.subr.bf16.mxu0 0
    %1440 = vmatpush1.bf16.msra.mxu0 0
    %1441 = vmatprep.subr.bf16.mxu0 0
    %1442 = vmatpush1.bf16.msra.mxu0 0
    %1443 = vmatprep.subr.bf16.mxu0 %v1103
    %1444 = vmatpush1.bf16.msra.mxu0 %v1102
    %1445 = vmatprep.subr.bf16.mxu0 0
    %1446 = vmatpush2.bf16.msra.mxu0 0
    %1447 = vmatprep.subr.bf16.mxu0 0
    %1448 = vmatpush2.bf16.msra.mxu0 0
    %1449 = vmatprep.subr.bf16.mxu0 0
    %1450 = vmatpush2.bf16.msra.mxu0 0
    %1451 = vmatprep.subr.bf16.mxu0 0
    %1452 = vmatpush2.bf16.msra.mxu0 0
    %1453 = vmatprep.subr.bf16.mxu0 0
    %1454 = vmatpush2.bf16.msra.mxu0 0
    %1455 = vmatprep.subr.bf16.mxu0 0
    %1456 = vmatpush2.bf16.msra.mxu0 0
    %1457 = vmatprep.subr.bf16.mxu0 0
    %1458 = vmatpush2.bf16.msra.mxu0 0
    %1459 = vmatprep.subr.bf16.mxu0 0
    %1460 = vmatpush2.bf16.msra.mxu0 0
    %1461 = vmatprep.mubr.bf16.mxu0 0
    %1462 = vmatmul.mubr.bf16.gmra.mxu0 %v1304
    %v1463 = vpop.f32.mrf.mxu0
    %v1464 = vadd.f32 %v1423, %v1463
    %v1465 = vpop.f32.mrf.mxu0
    %v1466 = vadd.f32 %v1425, %v1465
    %v1467 = vpop.f32.mrf.mxu0
    %v1468 = vpop.f32.mrf.mxu0
    %1469 = vdwg.mxu0
    %1470 = vmatprep.subr.bf16.mxu0 %v941
    %1471 = vmatpush1.bf16.msra.mxu0 %v940
    %1472 = vmatprep.subr.bf16.mxu0 %v937
    %1473 = vmatpush1.bf16.msra.mxu0 %v936
    %1474 = vmatprep.subr.bf16.mxu0 %v933
    %1475 = vmatpush1.bf16.msra.mxu0 %v932
    %1476 = vmatprep.subr.bf16.mxu0 %v929
    %1477 = vmatpush1.bf16.msra.mxu0 %v928
    %1478 = vmatprep.subr.bf16.mxu0 %v925
    %1479 = vmatpush1.bf16.msra.mxu0 %v924
    %1480 = vmatprep.subr.bf16.mxu0 %v921
    %1481 = vmatpush1.bf16.msra.mxu0 %v920
    %1482 = vmatprep.subr.bf16.mxu0 %v917
    %1483 = vmatpush1.bf16.msra.mxu0 %v916
    %1484 = vmatprep.subr.bf16.mxu0 %v913
    %1485 = vmatpush1.bf16.msra.mxu0 %v912
    %1486 = vmatprep.subr.bf16.mxu0 %v973
    %1487 = vmatpush2.bf16.msra.mxu0 %v972
    %1488 = vmatprep.subr.bf16.mxu0 %v969
    %1489 = vmatpush2.bf16.msra.mxu0 %v968
    %1490 = vmatprep.subr.bf16.mxu0 %v965
    %1491 = vmatpush2.bf16.msra.mxu0 %v964
    %1492 = vmatprep.subr.bf16.mxu0 %v961
    %1493 = vmatpush2.bf16.msra.mxu0 %v960
    %1494 = vmatprep.subr.bf16.mxu0 %v957
    %1495 = vmatpush2.bf16.msra.mxu0 %v956
    %1496 = vmatprep.subr.bf16.mxu0 %v953
    %1497 = vmatpush2.bf16.msra.mxu0 %v952
    %1498 = vmatprep.subr.bf16.mxu0 %v949
    %1499 = vmatpush2.bf16.msra.mxu0 %v948
    %1500 = vmatprep.subr.bf16.mxu0 %v945
    %1501 = vmatpush2.bf16.msra.mxu0 %v944
    %1502 = vmatprep.mubr.bf16.mxu0 %v310
    %1503 = vmatmul.mubr.bf16.gmra.mxu0 %v309
    %v1504 = vpop.f32.mrf.mxu0
    %v1505 = vadd.f32 0.0, %v1504
    %v1506 = vpop.f32.mrf.mxu0
    %v1507 = vadd.f32 0.0, %v1506
    %v1508 = vpop.f32.mrf.mxu0
    %v1509 = vpop.f32.mrf.mxu0
    %1510 = vdwg.mxu0
    %1511 = vmatprep.subr.bf16.mxu0 %v1005
    %1512 = vmatpush1.bf16.msra.mxu0 %v1004
    %1513 = vmatprep.subr.bf16.mxu0 %v1001
    %1514 = vmatpush1.bf16.msra.mxu0 %v1000
    %1515 = vmatprep.subr.bf16.mxu0 %v997
    %1516 = vmatpush1.bf16.msra.mxu0 %v996
    %1517 = vmatprep.subr.bf16.mxu0 %v993
    %1518 = vmatpush1.bf16.msra.mxu0 %v992
    %1519 = vmatprep.subr.bf16.mxu0 %v989
    %1520 = vmatpush1.bf16.msra.mxu0 %v988
    %1521 = vmatprep.subr.bf16.mxu0 %v985
    %1522 = vmatpush1.bf16.msra.mxu0 %v984
    %1523 = vmatprep.subr.bf16.mxu0 %v981
    %1524 = vmatpush1.bf16.msra.mxu0 %v980
    %1525 = vmatprep.subr.bf16.mxu0 %v977
    %1526 = vmatpush1.bf16.msra.mxu0 %v976
    %1527 = vmatprep.subr.bf16.mxu0 %v1037
    %1528 = vmatpush2.bf16.msra.mxu0 %v1036
    %1529 = vmatprep.subr.bf16.mxu0 %v1033
    %1530 = vmatpush2.bf16.msra.mxu0 %v1032
    %1531 = vmatprep.subr.bf16.mxu0 %v1029
    %1532 = vmatpush2.bf16.msra.mxu0 %v1028
    %1533 = vmatprep.subr.bf16.mxu0 %v1025
    %1534 = vmatpush2.bf16.msra.mxu0 %v1024
    %1535 = vmatprep.subr.bf16.mxu0 %v1021
    %1536 = vmatpush2.bf16.msra.mxu0 %v1020
    %1537 = vmatprep.subr.bf16.mxu0 %v1017
    %1538 = vmatpush2.bf16.msra.mxu0 %v1016
    %1539 = vmatprep.subr.bf16.mxu0 %v1013
    %1540 = vmatpush2.bf16.msra.mxu0 %v1012
    %1541 = vmatprep.subr.bf16.mxu0 %v1009
    %1542 = vmatpush2.bf16.msra.mxu0 %v1008
    %1543 = vmatprep.mubr.bf16.mxu0 %v312
    %1544 = vmatmul.mubr.bf16.gmra.mxu0 %v311
    %v1545 = vpop.f32.mrf.mxu0
    %v1546 = vadd.f32 %v1505, %v1545
    %v1547 = vpop.f32.mrf.mxu0
    %v1548 = vadd.f32 %v1507, %v1547
    %v1549 = vpop.f32.mrf.mxu0
    %v1550 = vpop.f32.mrf.mxu0
    %1551 = vdwg.mxu0
    %1552 = vmatprep.subr.bf16.mxu0 %v1069
    %1553 = vmatpush1.bf16.msra.mxu0 %v1068
    %1554 = vmatprep.subr.bf16.mxu0 %v1065
    %1555 = vmatpush1.bf16.msra.mxu0 %v1064
    %1556 = vmatprep.subr.bf16.mxu0 %v1061
    %1557 = vmatpush1.bf16.msra.mxu0 %v1060
    %1558 = vmatprep.subr.bf16.mxu0 %v1057
    %1559 = vmatpush1.bf16.msra.mxu0 %v1056
    %1560 = vmatprep.subr.bf16.mxu0 %v1053
    %1561 = vmatpush1.bf16.msra.mxu0 %v1052
    %1562 = vmatprep.subr.bf16.mxu0 %v1049
    %1563 = vmatpush1.bf16.msra.mxu0 %v1048
    %1564 = vmatprep.subr.bf16.mxu0 %v1045
    %1565 = vmatpush1.bf16.msra.mxu0 %v1044
    %1566 = vmatprep.subr.bf16.mxu0 %v1041
    %1567 = vmatpush1.bf16.msra.mxu0 %v1040
    %1568 = vmatprep.subr.bf16.mxu0 %v1101
    %1569 = vmatpush2.bf16.msra.mxu0 %v1100
    %1570 = vmatprep.subr.bf16.mxu0 %v1097
    %1571 = vmatpush2.bf16.msra.mxu0 %v1096
    %1572 = vmatprep.subr.bf16.mxu0 %v1093
    %1573 = vmatpush2.bf16.msra.mxu0 %v1092
    %1574 = vmatprep.subr.bf16.mxu0 %v1089
    %1575 = vmatpush2.bf16.msra.mxu0 %v1088
    %1576 = vmatprep.subr.bf16.mxu0 %v1085
    %1577 = vmatpush2.bf16.msra.mxu0 %v1084
    %1578 = vmatprep.subr.bf16.mxu0 %v1081
    %1579 = vmatpush2.bf16.msra.mxu0 %v1080
    %1580 = vmatprep.subr.bf16.mxu0 %v1077
    %1581 = vmatpush2.bf16.msra.mxu0 %v1076
    %1582 = vmatprep.subr.bf16.mxu0 %v1073
    %1583 = vmatpush2.bf16.msra.mxu0 %v1072
    %1584 = vmatprep.mubr.bf16.mxu0 %v314
    %1585 = vmatmul.mubr.bf16.gmra.mxu0 %v313
    %v1586 = vpop.f32.mrf.mxu0
    %v1587 = vadd.f32 %v1546, %v1586
    %v1588 = vpop.f32.mrf.mxu0
    %v1589 = vadd.f32 %v1548, %v1588
    %v1590 = vpop.f32.mrf.mxu0
    %v1591 = vpop.f32.mrf.mxu0
    %1592 = vdwg.mxu0
    %1593 = vmatprep.subr.bf16.mxu0 0
    %1594 = vmatpush1.bf16.msra.mxu0 0
    %1595 = vmatprep.subr.bf16.mxu0 0
    %1596 = vmatpush1.bf16.msra.mxu0 0
    %1597 = vmatprep.subr.bf16.mxu0 0
    %1598 = vmatpush1.bf16.msra.mxu0 0
    %1599 = vmatprep.subr.bf16.mxu0 0
    %1600 = vmatpush1.bf16.msra.mxu0 0
    %1601 = vmatprep.subr.bf16.mxu0 0
    %1602 = vmatpush1.bf16.msra.mxu0 0
    %1603 = vmatprep.subr.bf16.mxu0 0
    %1604 = vmatpush1.bf16.msra.mxu0 0
    %1605 = vmatprep.subr.bf16.mxu0 0
    %1606 = vmatpush1.bf16.msra.mxu0 0
    %1607 = vmatprep.subr.bf16.mxu0 %v1105
    %1608 = vmatpush1.bf16.msra.mxu0 %v1104
    %1609 = vmatprep.subr.bf16.mxu0 0
    %1610 = vmatpush2.bf16.msra.mxu0 0
    %1611 = vmatprep.subr.bf16.mxu0 0
    %1612 = vmatpush2.bf16.msra.mxu0 0
    %1613 = vmatprep.subr.bf16.mxu0 0
    %1614 = vmatpush2.bf16.msra.mxu0 0
    %1615 = vmatprep.subr.bf16.mxu0 0
    %1616 = vmatpush2.bf16.msra.mxu0 0
    %1617 = vmatprep.subr.bf16.mxu0 0
    %1618 = vmatpush2.bf16.msra.mxu0 0
    %1619 = vmatprep.subr.bf16.mxu0 0
    %1620 = vmatpush2.bf16.msra.mxu0 0
    %1621 = vmatprep.subr.bf16.mxu0 0
    %1622 = vmatpush2.bf16.msra.mxu0 0
    %1623 = vmatprep.subr.bf16.mxu0 0
    %1624 = vmatpush2.bf16.msra.mxu0 0
    %1625 = vmatprep.mubr.bf16.mxu0 0
    %1626 = vmatmul.mubr.bf16.gmra.mxu0 %v1304
    %v1627 = vpop.f32.mrf.mxu0
    %v1628 = vadd.f32 %v1587, %v1627
    %v1629 = vpop.f32.mrf.mxu0
    %v1630 = vadd.f32 %v1589, %v1629
    %v1631 = vpop.f32.mrf.mxu0
    %v1632 = vpop.f32.mrf.mxu0
    %1633 = vdwg.mxu0
    %vm1634 = vcmask 64512
    %v1636 = vsel %vm1634, 1.0, 0
    %1638 = vmatprep.subr.mxu0 0.0
    %1639 = vmatpush1.msra.mxu0 0.0
    %1640 = vmatprep.subr.mxu0 0.0
    %1641 = vmatpush1.msra.mxu0 0.0
    %1642 = vmatprep.subr.mxu0 0.0
    %1643 = vmatpush1.msra.mxu0 0.0
    %1644 = vmatprep.subr.mxu0 0.0
    %1645 = vmatpush1.msra.mxu0 0.0
    %1646 = vmatprep.subr.mxu0 0.0
    %1647 = vmatpush1.msra.mxu0 0.0
    %1648 = vmatprep.subr.mxu0 0.0
    %1649 = vmatpush1.msra.mxu0 0.0
    %1650 = vmatprep.subr.mxu0 0.0
    %1651 = vmatpush1.msra.mxu0 0.0
    %1652 = vmatprep.subr.mxu0 0.0
    %1653 = vmatpush1.msra.mxu0 0.0
    %1654 = vmatprep.subr.mxu0 0.0
    %1655 = vmatpush1.msra.mxu0 0.0
    %1656 = vmatprep.subr.mxu0 0.0
    %1657 = vmatpush1.msra.mxu0 0.0
    %1658 = vmatprep.subr.mxu0 0.0
    %1659 = vmatpush1.msra.mxu0 0.0
    %1660 = vmatprep.subr.mxu0 0.0
    %1661 = vmatpush1.msra.mxu0 0.0
    %1662 = vmatprep.subr.mxu0 0.0
    %1663 = vmatpush1.msra.mxu0 0.0
    %1664 = vmatprep.subr.mxu0 0.0
    %1665 = vmatpush1.msra.mxu0 0.0
    %1666 = vmatprep.subr.mxu0 0.0
    %1667 = vmatpush1.msra.mxu0 0.0
    %1668 = vmatprep.subr.mxu0 %v1466
    %1669 = vmatpush1.msra.mxu0 %v1464
    %1670 = vmatprep.subr.mxu0 0.0
    %1671 = vmatpush2.msra.mxu0 0.0
    %1672 = vmatprep.subr.mxu0 0.0
    %1673 = vmatpush2.msra.mxu0 0.0
    %1674 = vmatprep.subr.mxu0 0.0
    %1675 = vmatpush2.msra.mxu0 0.0
    %1676 = vmatprep.subr.mxu0 0.0
    %1677 = vmatpush2.msra.mxu0 0.0
    %1678 = vmatprep.subr.mxu0 0.0
    %1679 = vmatpush2.msra.mxu0 0.0
    %1680 = vmatprep.subr.mxu0 0.0
    %1681 = vmatpush2.msra.mxu0 0.0
    %1682 = vmatprep.subr.mxu0 0.0
    %1683 = vmatpush2.msra.mxu0 0.0
    %1684 = vmatprep.subr.mxu0 0.0
    %1685 = vmatpush2.msra.mxu0 0.0
    %1686 = vmatprep.subr.mxu0 0.0
    %1687 = vmatpush2.msra.mxu0 0.0
    %1688 = vmatprep.subr.mxu0 0.0
    %1689 = vmatpush2.msra.mxu0 0.0
    %1690 = vmatprep.subr.mxu0 0.0
    %1691 = vmatpush2.msra.mxu0 0.0
    %1692 = vmatprep.subr.mxu0 0.0
    %1693 = vmatpush2.msra.mxu0 0.0
    %1694 = vmatprep.subr.mxu0 0.0
    %1695 = vmatpush2.msra.mxu0 0.0
    %1696 = vmatprep.subr.mxu0 0.0
    %1697 = vmatpush2.msra.mxu0 0.0
    %1698 = vmatprep.subr.mxu0 0.0
    %1699 = vmatpush2.msra.mxu0 0.0
    %1700 = vmatprep.subr.mxu0 0.0
    %1701 = vmatpush2.msra.mxu0 0.0
    %1702 = vmatprep.mubr.f32.mxu0 0.0
    %1703 = vmatmul.mubr.f32.gmra.mxu0 %v1636
    %v1704 = vpop.f32.mrf.mxu0
    %v1705 = vadd.f32 0.0, %v1704
    %v1706 = vpop.f32.mrf.mxu0
    %v1707 = vadd.f32 0.0, %v1706
    %1708 = vdwg.mxu0
    %1709 = vmatprep.subr.mxu0 0.0
    %1710 = vmatpush1.msra.mxu0 0.0
    %1711 = vmatprep.subr.mxu0 0.0
    %1712 = vmatpush1.msra.mxu0 0.0
    %1713 = vmatprep.subr.mxu0 0.0
    %1714 = vmatpush1.msra.mxu0 0.0
    %1715 = vmatprep.subr.mxu0 0.0
    %1716 = vmatpush1.msra.mxu0 0.0
    %1717 = vmatprep.subr.mxu0 0.0
    %1718 = vmatpush1.msra.mxu0 0.0
    %1719 = vmatprep.subr.mxu0 0.0
    %1720 = vmatpush1.msra.mxu0 0.0
    %1721 = vmatprep.subr.mxu0 0.0
    %1722 = vmatpush1.msra.mxu0 0.0
    %1723 = vmatprep.subr.mxu0 0.0
    %1724 = vmatpush1.msra.mxu0 0.0
    %1725 = vmatprep.subr.mxu0 0.0
    %1726 = vmatpush1.msra.mxu0 0.0
    %1727 = vmatprep.subr.mxu0 0.0
    %1728 = vmatpush1.msra.mxu0 0.0
    %1729 = vmatprep.subr.mxu0 0.0
    %1730 = vmatpush1.msra.mxu0 0.0
    %1731 = vmatprep.subr.mxu0 0.0
    %1732 = vmatpush1.msra.mxu0 0.0
    %1733 = vmatprep.subr.mxu0 0.0
    %1734 = vmatpush1.msra.mxu0 0.0
    %1735 = vmatprep.subr.mxu0 0.0
    %1736 = vmatpush1.msra.mxu0 0.0
    %1737 = vmatprep.subr.mxu0 0.0
    %1738 = vmatpush1.msra.mxu0 0.0
    %1739 = vmatprep.subr.mxu0 %v1630
    %1740 = vmatpush1.msra.mxu0 %v1628
    %1741 = vmatprep.subr.mxu0 0.0
    %1742 = vmatpush2.msra.mxu0 0.0
    %1743 = vmatprep.subr.mxu0 0.0
    %1744 = vmatpush2.msra.mxu0 0.0
    %1745 = vmatprep.subr.mxu0 0.0
    %1746 = vmatpush2.msra.mxu0 0.0
    %1747 = vmatprep.subr.mxu0 0.0
    %1748 = vmatpush2.msra.mxu0 0.0
    %1749 = vmatprep.subr.mxu0 0.0
    %1750 = vmatpush2.msra.mxu0 0.0
    %1751 = vmatprep.subr.mxu0 0.0
    %1752 = vmatpush2.msra.mxu0 0.0
    %1753 = vmatprep.subr.mxu0 0.0
    %1754 = vmatpush2.msra.mxu0 0.0
    %1755 = vmatprep.subr.mxu0 0.0
    %1756 = vmatpush2.msra.mxu0 0.0
    %1757 = vmatprep.subr.mxu0 0.0
    %1758 = vmatpush2.msra.mxu0 0.0
    %1759 = vmatprep.subr.mxu0 0.0
    %1760 = vmatpush2.msra.mxu0 0.0
    %1761 = vmatprep.subr.mxu0 0.0
    %1762 = vmatpush2.msra.mxu0 0.0
    %1763 = vmatprep.subr.mxu0 0.0
    %1764 = vmatpush2.msra.mxu0 0.0
    %1765 = vmatprep.subr.mxu0 0.0
    %1766 = vmatpush2.msra.mxu0 0.0
    %1767 = vmatprep.subr.mxu0 0.0
    %1768 = vmatpush2.msra.mxu0 0.0
    %1769 = vmatprep.subr.mxu0 0.0
    %1770 = vmatpush2.msra.mxu0 0.0
    %1771 = vmatprep.subr.mxu0 0.0
    %1772 = vmatpush2.msra.mxu0 0.0
    %1773 = vmatprep.mubr.f32.mxu0 0.0
    %1774 = vmatmul.mubr.f32.gmra.mxu0 %v1636
    %v1775 = vpop.f32.mrf.mxu0
    %v1776 = vadd.f32 0.0, %v1775
    %v1777 = vpop.f32.mrf.mxu0
    %v1778 = vadd.f32 0.0, %v1777
    %1779 = vdwg.mxu0
    %v1780 = vmul.f32 %v1464, %v1464
    %v1781 = vmul.f32 %v1466, %v1466
    %v1782 = vmul.f32 %v1628, %v1628
    %v1783 = vmul.f32 %v1630, %v1630
    %1784 = vmatprep.subr.mxu0 0.0
    %1785 = vmatpush1.msra.mxu0 0.0
    %1786 = vmatprep.subr.mxu0 0.0
    %1787 = vmatpush1.msra.mxu0 0.0
    %1788 = vmatprep.subr.mxu0 0.0
    %1789 = vmatpush1.msra.mxu0 0.0
    %1790 = vmatprep.subr.mxu0 0.0
    %1791 = vmatpush1.msra.mxu0 0.0
    %1792 = vmatprep.subr.mxu0 0.0
    %1793 = vmatpush1.msra.mxu0 0.0
    %1794 = vmatprep.subr.mxu0 0.0
    %1795 = vmatpush1.msra.mxu0 0.0
    %1796 = vmatprep.subr.mxu0 0.0
    %1797 = vmatpush1.msra.mxu0 0.0
    %1798 = vmatprep.subr.mxu0 0.0
    %1799 = vmatpush1.msra.mxu0 0.0
    %1800 = vmatprep.subr.mxu0 0.0
    %1801 = vmatpush1.msra.mxu0 0.0
    %1802 = vmatprep.subr.mxu0 0.0
    %1803 = vmatpush1.msra.mxu0 0.0
    %1804 = vmatprep.subr.mxu0 0.0
    %1805 = vmatpush1.msra.mxu0 0.0
    %1806 = vmatprep.subr.mxu0 0.0
    %1807 = vmatpush1.msra.mxu0 0.0
    %1808 = vmatprep.subr.mxu0 0.0
    %1809 = vmatpush1.msra.mxu0 0.0
    %1810 = vmatprep.subr.mxu0 0.0
    %1811 = vmatpush1.msra.mxu0 0.0
    %1812 = vmatprep.subr.mxu0 0.0
    %1813 = vmatpush1.msra.mxu0 0.0
    %1814 = vmatprep.subr.mxu0 %v1781
    %1815 = vmatpush1.msra.mxu0 %v1780
    %1816 = vmatprep.subr.mxu0 0.0
    %1817 = vmatpush2.msra.mxu0 0.0
    %1818 = vmatprep.subr.mxu0 0.0
    %1819 = vmatpush2.msra.mxu0 0.0
    %1820 = vmatprep.subr.mxu0 0.0
    %1821 = vmatpush2.msra.mxu0 0.0
    %1822 = vmatprep.subr.mxu0 0.0
    %1823 = vmatpush2.msra.mxu0 0.0
    %1824 = vmatprep.subr.mxu0 0.0
    %1825 = vmatpush2.msra.mxu0 0.0
    %1826 = vmatprep.subr.mxu0 0.0
    %1827 = vmatpush2.msra.mxu0 0.0
    %1828 = vmatprep.subr.mxu0 0.0
    %1829 = vmatpush2.msra.mxu0 0.0
    %1830 = vmatprep.subr.mxu0 0.0
    %1831 = vmatpush2.msra.mxu0 0.0
    %1832 = vmatprep.subr.mxu0 0.0
    %1833 = vmatpush2.msra.mxu0 0.0
    %1834 = vmatprep.subr.mxu0 0.0
    %1835 = vmatpush2.msra.mxu0 0.0
    %1836 = vmatprep.subr.mxu0 0.0
    %1837 = vmatpush2.msra.mxu0 0.0
    %1838 = vmatprep.subr.mxu0 0.0
    %1839 = vmatpush2.msra.mxu0 0.0
    %1840 = vmatprep.subr.mxu0 0.0
    %1841 = vmatpush2.msra.mxu0 0.0
    %1842 = vmatprep.subr.mxu0 0.0
    %1843 = vmatpush2.msra.mxu0 0.0
    %1844 = vmatprep.subr.mxu0 0.0
    %1845 = vmatpush2.msra.mxu0 0.0
    %1846 = vmatprep.subr.mxu0 0.0
    %1847 = vmatpush2.msra.mxu0 0.0
    %1848 = vmatprep.mubr.f32.mxu0 0.0
    %1849 = vmatmul.mubr.f32.gmra.mxu0 %v1636
    %v1850 = vpop.f32.mrf.mxu0
    %v1851 = vadd.f32 0.0, %v1850
    %v1852 = vpop.f32.mrf.mxu0
    %v1853 = vadd.f32 0.0, %v1852
    %1854 = vdwg.mxu0
    %1855 = vmatprep.subr.mxu0 0.0
    %1856 = vmatpush1.msra.mxu0 0.0
    %1857 = vmatprep.subr.mxu0 0.0
    %1858 = vmatpush1.msra.mxu0 0.0
    %1859 = vmatprep.subr.mxu0 0.0
    %1860 = vmatpush1.msra.mxu0 0.0
    %1861 = vmatprep.subr.mxu0 0.0
    %1862 = vmatpush1.msra.mxu0 0.0
    %1863 = vmatprep.subr.mxu0 0.0
    %1864 = vmatpush1.msra.mxu0 0.0
    %1865 = vmatprep.subr.mxu0 0.0
    %1866 = vmatpush1.msra.mxu0 0.0
    %1867 = vmatprep.subr.mxu0 0.0
    %1868 = vmatpush1.msra.mxu0 0.0
    %1869 = vmatprep.subr.mxu0 0.0
    %1870 = vmatpush1.msra.mxu0 0.0
    %1871 = vmatprep.subr.mxu0 0.0
    %1872 = vmatpush1.msra.mxu0 0.0
    %1873 = vmatprep.subr.mxu0 0.0
    %1874 = vmatpush1.msra.mxu0 0.0
    %1875 = vmatprep.subr.mxu0 0.0
    %1876 = vmatpush1.msra.mxu0 0.0
    %1877 = vmatprep.subr.mxu0 0.0
    %1878 = vmatpush1.msra.mxu0 0.0
    %1879 = vmatprep.subr.mxu0 0.0
    %1880 = vmatpush1.msra.mxu0 0.0
    %1881 = vmatprep.subr.mxu0 0.0
    %1882 = vmatpush1.msra.mxu0 0.0
    %1883 = vmatprep.subr.mxu0 0.0
    %1884 = vmatpush1.msra.mxu0 0.0
    %1885 = vmatprep.subr.mxu0 %v1783
    %1886 = vmatpush1.msra.mxu0 %v1782
    %1887 = vmatprep.subr.mxu0 0.0
    %1888 = vmatpush2.msra.mxu0 0.0
    %1889 = vmatprep.subr.mxu0 0.0
    %1890 = vmatpush2.msra.mxu0 0.0
    %1891 = vmatprep.subr.mxu0 0.0
    %1892 = vmatpush2.msra.mxu0 0.0
    %1893 = vmatprep.subr.mxu0 0.0
    %1894 = vmatpush2.msra.mxu0 0.0
    %1895 = vmatprep.subr.mxu0 0.0
    %1896 = vmatpush2.msra.mxu0 0.0
    %1897 = vmatprep.subr.mxu0 0.0
    %1898 = vmatpush2.msra.mxu0 0.0
    %1899 = vmatprep.subr.mxu0 0.0
    %1900 = vmatpush2.msra.mxu0 0.0
    %1901 = vmatprep.subr.mxu0 0.0
    %1902 = vmatpush2.msra.mxu0 0.0
    %1903 = vmatprep.subr.mxu0 0.0
    %1904 = vmatpush2.msra.mxu0 0.0
    %1905 = vmatprep.subr.mxu0 0.0
    %1906 = vmatpush2.msra.mxu0 0.0
    %1907 = vmatprep.subr.mxu0 0.0
    %1908 = vmatpush2.msra.mxu0 0.0
    %1909 = vmatprep.subr.mxu0 0.0
    %1910 = vmatpush2.msra.mxu0 0.0
    %1911 = vmatprep.subr.mxu0 0.0
    %1912 = vmatpush2.msra.mxu0 0.0
    %1913 = vmatprep.subr.mxu0 0.0
    %1914 = vmatpush2.msra.mxu0 0.0
    %1915 = vmatprep.subr.mxu0 0.0
    %1916 = vmatpush2.msra.mxu0 0.0
    %1917 = vmatprep.subr.mxu0 0.0
    %1918 = vmatpush2.msra.mxu0 0.0
    %1919 = vmatprep.mubr.f32.mxu0 0.0
    %1920 = vmatmul.mubr.f32.gmra.mxu0 %v1636
    %v1921 = vpop.f32.mrf.mxu0
    %v1922 = vadd.f32 0.0, %v1921
    %v1923 = vpop.f32.mrf.mxu0
    %v1924 = vadd.f32 0.0, %v1923
    %1925 = vdwg.mxu0
    %v1926 = vmul.f32 %v1705, 0.125
    %v1927 = vmul.f32 %v1707, 0.125
    %v1928 = vmul.f32 %v1776, 0.125
    %v1929 = vmul.f32 %v1778, 0.125
    %v1930 = vmul.f32 %v1851, 0.125
    %v1931 = vmul.f32 %v1853, 0.125
    %v1932 = vmul.f32 %v1922, 0.125
    %v1933 = vmul.f32 %v1924, 0.125
    %v1934 = vmul.f32 %v1926, %v1926
    %v1935 = vmul.f32 %v1927, %v1927
    %v1936 = vmul.f32 %v1928, %v1928
    %v1937 = vmul.f32 %v1929, %v1929
    %v1938 = vsub.f32 %v1930, %v1934
    %v1939 = vsub.f32 %v1931, %v1935
    %v1940 = vsub.f32 %v1932, %v1936
    %v1941 = vsub.f32 %v1933, %v1937
    %v1942 = vmax.f32 %v1938, 0.0
    %v1943 = vmax.f32 %v1939, 0.0
    %v1944 = vmax.f32 %v1940, 0.0
    %v1945 = vmax.f32 %v1941, 0.0
    %v1946 = vld [vmem:[#allocation7] sm:$0xf]
    %v1947 = vadd.f32 %v1942, 1e-05
    %v1948 = vadd.f32 %v1943, 1e-05
    %v1949 = vadd.f32 %v1944, 1e-05
    %v1950 = vadd.f32 %v1945, 1e-05
    %v1951 = vrsqrt.pop %v1947
    %v1952 = vrsqrt.pop %v1948
    %v1953 = vrsqrt.pop %v1949
    %v1954 = vrsqrt.pop %v1950
    %v1959 = vcombine.low %v1951, %v1952
    %v1960 = vcombine.low %v1953, %v1954
    %v1962 = vunpack.c.l.s4 1966171168
    %v1963 = vunpack.c.0.s8 %v1962
    %v1964 = vlaneseq
    %v1965 = vshrl.u32 %v1964, 7
    %v1966 = vsub.s32 %v1963, %v1965
    %v1967 = vrot.slane %v1959, %v1966
    %v1969 = vunpack.c.l.s4 1966171168
    %v1970 = vunpack.c.0.s8 %v1969
    %v1971 = vlaneseq
    %v1972 = vshrl.u32 %v1971, 7
    %v1973 = vsub.s32 %v1970, %v1972
    %v1974 = vrot.slane %v1960, %v1973
    %v1975 = vcombine.low %v1967, %v1974
    %v1977 = vunpack.c.l.s4 1966171168
    %v1978 = vunpack.c.0.s8 %v1977
    %v1979 = vlaneseq
    %v1980 = vshrl.u32 %v1979, 7
    %v1981 = vsub.s32 %v1978, %v1980
    %v1982 = vrot.slane %v1975, %v1981
    %v1984 = vmul.f32 %v1946, %v1982
    %v1985 = vld [vmem:[%s3] sm:$0xf]
    %v1987 = vlaneseq
    %v1988 = vshrl.u32 %v1987, 7
    %v1989 = vsub.s32 0, %v1988
    %v1990 = vrot.slane %v1984, %v1989
    %v1991 = vlaneseq
    %v1992 = vshrl.u32 %v1991, 7
    %v1993 = vsub.s32 1, %v1992
    %v1994 = vrot.slane %v1984, %v1993
    %v1995 = vlaneseq
    %v1996 = vshrl.u32 %v1995, 7
    %v1997 = vsub.s32 2, %v1996
    %v1998 = vrot.slane %v1984, %v1997
    %v1999 = vlaneseq
    %v2000 = vshrl.u32 %v1999, 7
    %v2001 = vsub.s32 3, %v2000
    %v2002 = vrot.slane %v1984, %v2001
    %v2007 = vmul.f32 %v1926, %v1990
    %v2008 = vmul.f32 %v1927, %v1994
    %v2009 = vmul.f32 %v1928, %v1998
    %v2010 = vmul.f32 %v1929, %v2002
    %v2015 = vcombine.low %v2007, %v2008
    %v2016 = vcombine.low %v2009, %v2010
    %v2018 = vunpack.c.l.s4 1966171168
    %v2019 = vunpack.c.0.s8 %v2018
    %v2020 = vlaneseq
    %v2021 = vshrl.u32 %v2020, 7
    %v2022 = vsub.s32 %v2019, %v2021
    %v2023 = vrot.slane %v2015, %v2022
    %v2025 = vunpack.c.l.s4 1966171168
    %v2026 = vunpack.c.0.s8 %v2025
    %v2027 = vlaneseq
    %v2028 = vshrl.u32 %v2027, 7
    %v2029 = vsub.s32 %v2026, %v2028
    %v2030 = vrot.slane %v2016, %v2029
    %v2031 = vcombine.low %v2023, %v2030
    %v2033 = vunpack.c.l.s4 1966171168
    %v2034 = vunpack.c.0.s8 %v2033
    %v2035 = vlaneseq
    %v2036 = vshrl.u32 %v2035, 7
    %v2037 = vsub.s32 %v2034, %v2036
    %v2038 = vrot.slane %v2031, %v2037
    %v2040 = vsub.f32 %v1985, %v2038
    %v2041 = vmul.f32 %v1464, %v1990
    %v2042 = vmul.f32 %v1466, %v1994
    %v2043 = vmul.f32 %v1628, %v1998
    %v2044 = vmul.f32 %v1630, %v2002
    %v2046 = vlaneseq
    %v2047 = vshrl.u32 %v2046, 7
    %v2048 = vsub.s32 0, %v2047
    %v2049 = vrot.slane %v2040, %v2048
    %v2050 = vlaneseq
    %v2051 = vshrl.u32 %v2050, 7
    %v2052 = vsub.s32 1, %v2051
    %v2053 = vrot.slane %v2040, %v2052
    %v2054 = vlaneseq
    %v2055 = vshrl.u32 %v2054, 7
    %v2056 = vsub.s32 2, %v2055
    %v2057 = vrot.slane %v2040, %v2056
    %v2058 = vlaneseq
    %v2059 = vshrl.u32 %v2058, 7
    %v2060 = vsub.s32 3, %v2059
    %v2061 = vrot.slane %v2040, %v2060
    %v2066 = vadd.f32 %v2041, %v2049
    %v2067 = vadd.f32 %v2042, %v2053
    %v2068 = vadd.f32 %v2043, %v2057
    %v2069 = vadd.f32 %v2044, %v2061
    %v2070 = vmax.f32 %v2066, 0.0
    %v2071 = vmax.f32 %v2067, 0.0
    %v2072 = vmax.f32 %v2068, 0.0
    %v2073 = vmax.f32 %v2069, 0.0
    %v2074 = vpack.c.bf16 %v2070, %v2070
    %v2075 = vpack.c.bf16 %v2071, %v2071
    %v2076 = vpack.c.bf16 %v2072, %v2072
    %v2077 = vpack.c.bf16 %v2073, %v2073
    %v2078 = vld [vmem:[#allocation8] sm:$0xff]
    %v2079 = vld [vmem:[#allocation8 + $0x8] sm:$0xff]
    %v2080 = vld [vmem:[#allocation8 + $0x10] sm:$0xff]
    %v2081 = vld [vmem:[#allocation8 + $0x18] sm:$0xff]
    %v2082 = vld [vmem:[#allocation8 + $0x20] sm:$0xff]
    %v2083 = vld [vmem:[#allocation8 + $0x28] sm:$0xff]
    %v2084 = vld [vmem:[#allocation8 + $0x30] sm:$0xff]
    %v2085 = vld [vmem:[#allocation8 + $0x38] sm:$0xff]
    %v2086 = vld [vmem:[#allocation8 + $0x40] sm:$0xff]
    %v2087 = vld [vmem:[#allocation8 + $0x48] sm:$0xff]
    %v2088 = vld [vmem:[#allocation8 + $0x50] sm:$0xff]
    %v2089 = vld [vmem:[#allocation8 + $0x58] sm:$0xff]
    %v2090 = vld [vmem:[#allocation8 + $0x60] sm:$0xff]
    %v2091 = vld [vmem:[#allocation8 + $0x68] sm:$0xff]
    %v2092 = vld [vmem:[#allocation8 + $0x70] sm:$0xff]
    %v2093 = vld [vmem:[#allocation8 + $0x78] sm:$0xff]
    %v2094 = vld [vmem:[#allocation8 + $0x80] sm:$0xff]
    %v2095 = vld [vmem:[#allocation8 + $0x88] sm:$0xff]
    %v2096 = vld [vmem:[#allocation8 + $0x90] sm:$0xff]
    %v2097 = vld [vmem:[#allocation8 + $0x98] sm:$0xff]
    %v2098 = vld [vmem:[#allocation8 + $0xa0] sm:$0xff]
    %v2099 = vld [vmem:[#allocation8 + $0xa8] sm:$0xff]
    %v2100 = vld [vmem:[#allocation8 + $0xb0] sm:$0xff]
    %v2101 = vld [vmem:[#allocation8 + $0xb8] sm:$0xff]
    %v2102 = vld [vmem:[#allocation8 + $0xc0] sm:$0xff]
    %v2103 = vld [vmem:[#allocation8 + $0xc8] sm:$0xff]
    %v2104 = vld [vmem:[#allocation8 + $0xd0] sm:$0xff]
    %v2105 = vld [vmem:[#allocation8 + $0xd8] sm:$0xff]
    %v2106 = vld [vmem:[#allocation8 + $0xe0] sm:$0xff]
    %v2107 = vld [vmem:[#allocation8 + $0xe8] sm:$0xff]
    %v2108 = vld [vmem:[#allocation8 + $0xf0] sm:$0xff]
    %v2109 = vld [vmem:[#allocation8 + $0xf8] sm:$0xff]
    %v2110 = vld [vmem:[#allocation8 + $0x100] sm:$0xff]
    %v2111 = vld [vmem:[#allocation8 + $0x108] sm:$0xff]
    %v2112 = vld [vmem:[#allocation8 + $0x110] sm:$0xff]
    %v2113 = vld [vmem:[#allocation8 + $0x118] sm:$0xff]
    %v2114 = vld [vmem:[#allocation8 + $0x120] sm:$0xff]
    %v2115 = vld [vmem:[#allocation8 + $0x128] sm:$0xff]
    %v2116 = vld [vmem:[#allocation8 + $0x130] sm:$0xff]
    %v2117 = vld [vmem:[#allocation8 + $0x138] sm:$0xff]
    %v2118 = vld [vmem:[#allocation8 + $0x140] sm:$0xff]
    %v2119 = vld [vmem:[#allocation8 + $0x148] sm:$0xff]
    %v2120 = vld [vmem:[#allocation8 + $0x150] sm:$0xff]
    %v2121 = vld [vmem:[#allocation8 + $0x158] sm:$0xff]
    %v2122 = vld [vmem:[#allocation8 + $0x160] sm:$0xff]
    %v2123 = vld [vmem:[#allocation8 + $0x168] sm:$0xff]
    %v2124 = vld [vmem:[#allocation8 + $0x170] sm:$0xff]
    %v2125 = vld [vmem:[#allocation8 + $0x178] sm:$0xff]
    %v2126 = vld [vmem:[#allocation8 + $0x180] sm:$0xff]
    %v2127 = vld [vmem:[#allocation8 + $0x188] sm:$0xff]
    %v2128 = vld [vmem:[#allocation8 + $0x190] sm:$0xff]
    %v2129 = vld [vmem:[#allocation8 + $0x198] sm:$0xff]
    %v2130 = vld [vmem:[#allocation8 + $0x1a0] sm:$0xff]
    %v2131 = vld [vmem:[#allocation8 + $0x1a8] sm:$0xff]
    %v2132 = vld [vmem:[#allocation8 + $0x1b0] sm:$0xff]
    %v2133 = vld [vmem:[#allocation8 + $0x1b8] sm:$0xff]
    %v2134 = vld [vmem:[#allocation8 + $0x1c0] sm:$0xff]
    %v2135 = vld [vmem:[#allocation8 + $0x1c8] sm:$0xff]
    %v2136 = vld [vmem:[#allocation8 + $0x1d0] sm:$0xff]
    %v2137 = vld [vmem:[#allocation8 + $0x1d8] sm:$0xff]
    %v2138 = vld [vmem:[#allocation8 + $0x1e0] sm:$0xff]
    %v2139 = vld [vmem:[#allocation8 + $0x1e8] sm:$0xff]
    %v2140 = vld [vmem:[#allocation8 + $0x1f0] sm:$0xff]
    %v2141 = vld [vmem:[#allocation8 + $0x1f8] sm:$0xff]
    %v2206 = vunpack.c.l.b16 %v2078
    %v2207 = vunpack.c.h.b16 %v2078
    %v2208 = vunpack.c.l.b16 %v2079
    %v2209 = vunpack.c.h.b16 %v2079
    %v2210 = vunpack.c.l.b16 %v2080
    %v2211 = vunpack.c.h.b16 %v2080
    %v2212 = vunpack.c.l.b16 %v2081
    %v2213 = vunpack.c.h.b16 %v2081
    %v2214 = vunpack.c.l.b16 %v2082
    %v2215 = vunpack.c.h.b16 %v2082
    %v2216 = vunpack.c.l.b16 %v2083
    %v2217 = vunpack.c.h.b16 %v2083
    %v2218 = vunpack.c.l.b16 %v2084
    %v2219 = vunpack.c.h.b16 %v2084
    %v2220 = vunpack.c.l.b16 %v2085
    %v2221 = vunpack.c.h.b16 %v2085
    %v2222 = vunpack.c.l.b16 %v2086
    %v2223 = vunpack.c.h.b16 %v2086
    %v2224 = vunpack.c.l.b16 %v2087
    %v2225 = vunpack.c.h.b16 %v2087
    %v2226 = vunpack.c.l.b16 %v2088
    %v2227 = vunpack.c.h.b16 %v2088
    %v2228 = vunpack.c.l.b16 %v2089
    %v2229 = vunpack.c.h.b16 %v2089
    %v2230 = vunpack.c.l.b16 %v2090
    %v2231 = vunpack.c.h.b16 %v2090
    %v2232 = vunpack.c.l.b16 %v2091
    %v2233 = vunpack.c.h.b16 %v2091
    %v2234 = vunpack.c.l.b16 %v2092
    %v2235 = vunpack.c.h.b16 %v2092
    %v2236 = vunpack.c.l.b16 %v2093
    %v2237 = vunpack.c.h.b16 %v2093
    %v2238 = vunpack.c.l.b16 %v2094
    %v2239 = vunpack.c.h.b16 %v2094
    %v2240 = vunpack.c.l.b16 %v2095
    %v2241 = vunpack.c.h.b16 %v2095
    %v2242 = vunpack.c.l.b16 %v2096
    %v2243 = vunpack.c.h.b16 %v2096
    %v2244 = vunpack.c.l.b16 %v2097
    %v2245 = vunpack.c.h.b16 %v2097
    %v2246 = vunpack.c.l.b16 %v2098
    %v2247 = vunpack.c.h.b16 %v2098
    %v2248 = vunpack.c.l.b16 %v2099
    %v2249 = vunpack.c.h.b16 %v2099
    %v2250 = vunpack.c.l.b16 %v2100
    %v2251 = vunpack.c.h.b16 %v2100
    %v2252 = vunpack.c.l.b16 %v2101
    %v2253 = vunpack.c.h.b16 %v2101
    %v2254 = vunpack.c.l.b16 %v2102
    %v2255 = vunpack.c.h.b16 %v2102
    %v2256 = vunpack.c.l.b16 %v2103
    %v2257 = vunpack.c.h.b16 %v2103
    %v2258 = vunpack.c.l.b16 %v2104
    %v2259 = vunpack.c.h.b16 %v2104
    %v2260 = vunpack.c.l.b16 %v2105
    %v2261 = vunpack.c.h.b16 %v2105
    %v2262 = vunpack.c.l.b16 %v2106
    %v2263 = vunpack.c.h.b16 %v2106
    %v2264 = vunpack.c.l.b16 %v2107
    %v2265 = vunpack.c.h.b16 %v2107
    %v2266 = vunpack.c.l.b16 %v2108
    %v2267 = vunpack.c.h.b16 %v2108
    %v2268 = vunpack.c.l.b16 %v2109
    %v2269 = vunpack.c.h.b16 %v2109
    %v2270 = vunpack.c.l.b16 %v2110
    %v2271 = vunpack.c.h.b16 %v2110
    %v2272 = vunpack.c.l.b16 %v2111
    %v2273 = vunpack.c.h.b16 %v2111
    %v2274 = vunpack.c.l.b16 %v2112
    %v2275 = vunpack.c.h.b16 %v2112
    %v2276 = vunpack.c.l.b16 %v2113
    %v2277 = vunpack.c.h.b16 %v2113
    %v2278 = vunpack.c.l.b16 %v2114
    %v2279 = vunpack.c.h.b16 %v2114
    %v2280 = vunpack.c.l.b16 %v2115
    %v2281 = vunpack.c.h.b16 %v2115
    %v2282 = vunpack.c.l.b16 %v2116
    %v2283 = vunpack.c.h.b16 %v2116
    %v2284 = vunpack.c.l.b16 %v2117
    %v2285 = vunpack.c.h.b16 %v2117
    %v2286 = vunpack.c.l.b16 %v2118
    %v2287 = vunpack.c.h.b16 %v2118
    %v2288 = vunpack.c.l.b16 %v2119
    %v2289 = vunpack.c.h.b16 %v2119
    %v2290 = vunpack.c.l.b16 %v2120
    %v2291 = vunpack.c.h.b16 %v2120
    %v2292 = vunpack.c.l.b16 %v2121
    %v2293 = vunpack.c.h.b16 %v2121
    %v2294 = vunpack.c.l.b16 %v2122
    %v2295 = vunpack.c.h.b16 %v2122
    %v2296 = vunpack.c.l.b16 %v2123
    %v2297 = vunpack.c.h.b16 %v2123
    %v2298 = vunpack.c.l.b16 %v2124
    %v2299 = vunpack.c.h.b16 %v2124
    %v2300 = vunpack.c.l.b16 %v2125
    %v2301 = vunpack.c.h.b16 %v2125
    %v2302 = vunpack.c.l.b16 %v2126
    %v2303 = vunpack.c.h.b16 %v2126
    %v2304 = vunpack.c.l.b16 %v2127
    %v2305 = vunpack.c.h.b16 %v2127
    %v2306 = vunpack.c.l.b16 %v2128
    %v2307 = vunpack.c.h.b16 %v2128
    %v2308 = vunpack.c.l.b16 %v2129
    %v2309 = vunpack.c.h.b16 %v2129
    %v2310 = vunpack.c.l.b16 %v2130
    %v2311 = vunpack.c.h.b16 %v2130
    %v2312 = vunpack.c.l.b16 %v2131
    %v2313 = vunpack.c.h.b16 %v2131
    %v2314 = vunpack.c.l.b16 %v2132
    %v2315 = vunpack.c.h.b16 %v2132
    %v2316 = vunpack.c.l.b16 %v2133
    %v2317 = vunpack.c.h.b16 %v2133
    %v2318 = vunpack.c.l.b16 %v2134
    %v2319 = vunpack.c.h.b16 %v2134
    %v2320 = vunpack.c.l.b16 %v2135
    %v2321 = vunpack.c.h.b16 %v2135
    %v2322 = vunpack.c.l.b16 %v2136
    %v2323 = vunpack.c.h.b16 %v2136
    %v2324 = vunpack.c.l.b16 %v2137
    %v2325 = vunpack.c.h.b16 %v2137
    %v2326 = vunpack.c.l.b16 %v2138
    %v2327 = vunpack.c.h.b16 %v2138
    %v2328 = vunpack.c.l.b16 %v2139
    %v2329 = vunpack.c.h.b16 %v2139
    %v2330 = vunpack.c.l.b16 %v2140
    %v2331 = vunpack.c.h.b16 %v2140
    %v2332 = vunpack.c.l.b16 %v2141
    %v2333 = vunpack.c.h.b16 %v2141
    %v2334 = vpack.c.b16 %v2208, %v2206
    %v2335 = vpack.c.b16 %v2209, %v2207
    %v2336 = vpack.c.b16 %v2212, %v2210
    %v2337 = vpack.c.b16 %v2213, %v2211
    %v2338 = vpack.c.b16 %v2216, %v2214
    %v2339 = vpack.c.b16 %v2217, %v2215
    %v2340 = vpack.c.b16 %v2220, %v2218
    %v2341 = vpack.c.b16 %v2221, %v2219
    %v2342 = vpack.c.b16 %v2224, %v2222
    %v2343 = vpack.c.b16 %v2225, %v2223
    %v2344 = vpack.c.b16 %v2228, %v2226
    %v2345 = vpack.c.b16 %v2229, %v2227
    %v2346 = vpack.c.b16 %v2232, %v2230
    %v2347 = vpack.c.b16 %v2233, %v2231
    %v2348 = vpack.c.b16 %v2236, %v2234
    %v2349 = vpack.c.b16 %v2237, %v2235
    %v2350 = vpack.c.b16 %v2240, %v2238
    %v2351 = vpack.c.b16 %v2241, %v2239
    %v2352 = vpack.c.b16 %v2244, %v2242
    %v2353 = vpack.c.b16 %v2245, %v2243
    %v2354 = vpack.c.b16 %v2248, %v2246
    %v2355 = vpack.c.b16 %v2249, %v2247
    %v2356 = vpack.c.b16 %v2252, %v2250
    %v2357 = vpack.c.b16 %v2253, %v2251
    %v2358 = vpack.c.b16 %v2256, %v2254
    %v2359 = vpack.c.b16 %v2257, %v2255
    %v2360 = vpack.c.b16 %v2260, %v2258
    %v2361 = vpack.c.b16 %v2261, %v2259
    %v2362 = vpack.c.b16 %v2264, %v2262
    %v2363 = vpack.c.b16 %v2265, %v2263
    %v2364 = vpack.c.b16 %v2268, %v2266
    %v2365 = vpack.c.b16 %v2269, %v2267
    %v2366 = vpack.c.b16 %v2272, %v2270
    %v2367 = vpack.c.b16 %v2273, %v2271
    %v2368 = vpack.c.b16 %v2276, %v2274
    %v2369 = vpack.c.b16 %v2277, %v2275
    %v2370 = vpack.c.b16 %v2280, %v2278
    %v2371 = vpack.c.b16 %v2281, %v2279
    %v2372 = vpack.c.b16 %v2284, %v2282
    %v2373 = vpack.c.b16 %v2285, %v2283
    %v2374 = vpack.c.b16 %v2288, %v2286
    %v2375 = vpack.c.b16 %v2289, %v2287
    %v2376 = vpack.c.b16 %v2292, %v2290
    %v2377 = vpack.c.b16 %v2293, %v2291
    %v2378 = vpack.c.b16 %v2296, %v2294
    %v2379 = vpack.c.b16 %v2297, %v2295
    %v2380 = vpack.c.b16 %v2300, %v2298
    %v2381 = vpack.c.b16 %v2301, %v2299
    %v2382 = vpack.c.b16 %v2304, %v2302
    %v2383 = vpack.c.b16 %v2305, %v2303
    %v2384 = vpack.c.b16 %v2308, %v2306
    %v2385 = vpack.c.b16 %v2309, %v2307
    %v2386 = vpack.c.b16 %v2312, %v2310
    %v2387 = vpack.c.b16 %v2313, %v2311
    %v2388 = vpack.c.b16 %v2316, %v2314
    %v2389 = vpack.c.b16 %v2317, %v2315
    %v2390 = vpack.c.b16 %v2320, %v2318
    %v2391 = vpack.c.b16 %v2321, %v2319
    %v2392 = vpack.c.b16 %v2324, %v2322
    %v2393 = vpack.c.b16 %v2325, %v2323
    %v2394 = vpack.c.b16 %v2328, %v2326
    %v2395 = vpack.c.b16 %v2329, %v2327
    %v2396 = vpack.c.b16 %v2332, %v2330
    %v2397 = vpack.c.b16 %v2333, %v2331
    %2462 = vmatprep.subr.bf16.mxu0 %v2349
    %2463 = vmatpush1.bf16.msra.mxu0 %v2348
    %2464 = vmatprep.subr.bf16.mxu0 %v2347
    %2465 = vmatpush1.bf16.msra.mxu0 %v2346
    %2466 = vmatprep.subr.bf16.mxu0 %v2345
    %2467 = vmatpush1.bf16.msra.mxu0 %v2344
    %2468 = vmatprep.subr.bf16.mxu0 %v2343
    %2469 = vmatpush1.bf16.msra.mxu0 %v2342
    %2470 = vmatprep.subr.bf16.mxu0 %v2341
    %2471 = vmatpush1.bf16.msra.mxu0 %v2340
    %2472 = vmatprep.subr.bf16.mxu0 %v2339
    %2473 = vmatpush1.bf16.msra.mxu0 %v2338
    %2474 = vmatprep.subr.bf16.mxu0 %v2337
    %2475 = vmatpush1.bf16.msra.mxu0 %v2336
    %2476 = vmatprep.subr.bf16.mxu0 %v2335
    %2477 = vmatpush1.bf16.msra.mxu0 %v2334
    %2478 = vmatprep.subr.bf16.mxu0 %v2365
    %2479 = vmatpush2.bf16.msra.mxu0 %v2364
    %2480 = vmatprep.subr.bf16.mxu0 %v2363
    %2481 = vmatpush2.bf16.msra.mxu0 %v2362
    %2482 = vmatprep.subr.bf16.mxu0 %v2361
    %2483 = vmatpush2.bf16.msra.mxu0 %v2360
    %2484 = vmatprep.subr.bf16.mxu0 %v2359
    %2485 = vmatpush2.bf16.msra.mxu0 %v2358
    %2486 = vmatprep.subr.bf16.mxu0 %v2357
    %2487 = vmatpush2.bf16.msra.mxu0 %v2356
    %2488 = vmatprep.subr.bf16.mxu0 %v2355
    %2489 = vmatpush2.bf16.msra.mxu0 %v2354
    %2490 = vmatprep.subr.bf16.mxu0 %v2353
    %2491 = vmatpush2.bf16.msra.mxu0 %v2352
    %2492 = vmatprep.subr.bf16.mxu0 %v2351
    %2493 = vmatpush2.bf16.msra.mxu0 %v2350
    %2494 = vmatprep.mubr.bf16.mxu0 %v2075
    %2495 = vmatmul.mubr.bf16.gmra.mxu0 %v2074
    %v2496 = vpop.f32.mrf.mxu0
    %v2497 = vadd.f32 0.0, %v2496
    %v2498 = vpop.f32.mrf.mxu0
    %v2499 = vadd.f32 0.0, %v2498
    %v2500 = vpop.f32.mrf.mxu0
    %v2501 = vpop.f32.mrf.mxu0
    %2502 = vdwg.mxu0
    %2503 = vmatprep.subr.bf16.mxu0 %v2381
    %2504 = vmatpush1.bf16.msra.mxu0 %v2380
    %2505 = vmatprep.subr.bf16.mxu0 %v2379
    %2506 = vmatpush1.bf16.msra.mxu0 %v2378
    %2507 = vmatprep.subr.bf16.mxu0 %v2377
    %2508 = vmatpush1.bf16.msra.mxu0 %v2376
    %2509 = vmatprep.subr.bf16.mxu0 %v2375
    %2510 = vmatpush1.bf16.msra.mxu0 %v2374
    %2511 = vmatprep.subr.bf16.mxu0 %v2373
    %2512 = vmatpush1.bf16.msra.mxu0 %v2372
    %2513 = vmatprep.subr.bf16.mxu0 %v2371
    %2514 = vmatpush1.bf16.msra.mxu0 %v2370
    %2515 = vmatprep.subr.bf16.mxu0 %v2369
    %2516 = vmatpush1.bf16.msra.mxu0 %v2368
    %2517 = vmatprep.subr.bf16.mxu0 %v2367
    %2518 = vmatpush1.bf16.msra.mxu0 %v2366
    %2519 = vmatprep.subr.bf16.mxu0 %v2397
    %2520 = vmatpush2.bf16.msra.mxu0 %v2396
    %2521 = vmatprep.subr.bf16.mxu0 %v2395
    %2522 = vmatpush2.bf16.msra.mxu0 %v2394
    %2523 = vmatprep.subr.bf16.mxu0 %v2393
    %2524 = vmatpush2.bf16.msra.mxu0 %v2392
    %2525 = vmatprep.subr.bf16.mxu0 %v2391
    %2526 = vmatpush2.bf16.msra.mxu0 %v2390
    %2527 = vmatprep.subr.bf16.mxu0 %v2389
    %2528 = vmatpush2.bf16.msra.mxu0 %v2388
    %2529 = vmatprep.subr.bf16.mxu0 %v2387
    %2530 = vmatpush2.bf16.msra.mxu0 %v2386
    %2531 = vmatprep.subr.bf16.mxu0 %v2385
    %2532 = vmatpush2.bf16.msra.mxu0 %v2384
    %2533 = vmatprep.subr.bf16.mxu0 %v2383
    %2534 = vmatpush2.bf16.msra.mxu0 %v2382
    %2535 = vmatprep.mubr.bf16.mxu0 %v2077
    %2536 = vmatmul.mubr.bf16.gmra.mxu0 %v2076
    %v2537 = vpop.f32.mrf.mxu0
    %v2538 = vadd.f32 %v2497, %v2537
    %v2539 = vpop.f32.mrf.mxu0
    %v2540 = vadd.f32 %v2499, %v2539
    %v2541 = vpop.f32.mrf.mxu0
    %v2542 = vpop.f32.mrf.mxu0
    %2543 = vdwg.mxu0
    %2544 = vmatprep.subr.mxu0 0.0
    %2545 = vmatpush1.msra.mxu0 0.0
    %2546 = vmatprep.subr.mxu0 0.0
    %2547 = vmatpush1.msra.mxu0 0.0
    %2548 = vmatprep.subr.mxu0 0.0
    %2549 = vmatpush1.msra.mxu0 0.0
    %2550 = vmatprep.subr.mxu0 0.0
    %2551 = vmatpush1.msra.mxu0 0.0
    %2552 = vmatprep.subr.mxu0 0.0
    %2553 = vmatpush1.msra.mxu0 0.0
    %2554 = vmatprep.subr.mxu0 0.0
    %2555 = vmatpush1.msra.mxu0 0.0
    %2556 = vmatprep.subr.mxu0 0.0
    %2557 = vmatpush1.msra.mxu0 0.0
    %2558 = vmatprep.subr.mxu0 0.0
    %2559 = vmatpush1.msra.mxu0 0.0
    %2560 = vmatprep.subr.mxu0 0.0
    %2561 = vmatpush1.msra.mxu0 0.0
    %2562 = vmatprep.subr.mxu0 0.0
    %2563 = vmatpush1.msra.mxu0 0.0
    %2564 = vmatprep.subr.mxu0 0.0
    %2565 = vmatpush1.msra.mxu0 0.0
    %2566 = vmatprep.subr.mxu0 0.0
    %2567 = vmatpush1.msra.mxu0 0.0
    %2568 = vmatprep.subr.mxu0 0.0
    %2569 = vmatpush1.msra.mxu0 0.0
    %2570 = vmatprep.subr.mxu0 0.0
    %2571 = vmatpush1.msra.mxu0 0.0
    %2572 = vmatprep.subr.mxu0 0.0
    %2573 = vmatpush1.msra.mxu0 0.0
    %2574 = vmatprep.subr.mxu0 %v2540
    %2575 = vmatpush1.msra.mxu0 %v2538
    %2576 = vmatprep.subr.mxu0 0.0
    %2577 = vmatpush2.msra.mxu0 0.0
    %2578 = vmatprep.subr.mxu0 0.0
    %2579 = vmatpush2.msra.mxu0 0.0
    %2580 = vmatprep.subr.mxu0 0.0
    %2581 = vmatpush2.msra.mxu0 0.0
    %2582 = vmatprep.subr.mxu0 0.0
    %2583 = vmatpush2.msra.mxu0 0.0
    %2584 = vmatprep.subr.mxu0 0.0
    %2585 = vmatpush2.msra.mxu0 0.0
    %2586 = vmatprep.subr.mxu0 0.0
    %2587 = vmatpush2.msra.mxu0 0.0
    %2588 = vmatprep.subr.mxu0 0.0
    %2589 = vmatpush2.msra.mxu0 0.0
    %2590 = vmatprep.subr.mxu0 0.0
    %2591 = vmatpush2.msra.mxu0 0.0
    %2592 = vmatprep.subr.mxu0 0.0
    %2593 = vmatpush2.msra.mxu0 0.0
    %2594 = vmatprep.subr.mxu0 0.0
    %2595 = vmatpush2.msra.mxu0 0.0
    %2596 = vmatprep.subr.mxu0 0.0
    %2597 = vmatpush2.msra.mxu0 0.0
    %2598 = vmatprep.subr.mxu0 0.0
    %2599 = vmatpush2.msra.mxu0 0.0
    %2600 = vmatprep.subr.mxu0 0.0
    %2601 = vmatpush2.msra.mxu0 0.0
    %2602 = vmatprep.subr.mxu0 0.0
    %2603 = vmatpush2.msra.mxu0 0.0
    %2604 = vmatprep.subr.mxu0 0.0
    %2605 = vmatpush2.msra.mxu0 0.0
    %2606 = vmatprep.subr.mxu0 0.0
    %2607 = vmatpush2.msra.mxu0 0.0
    %2608 = vmatprep.mubr.f32.mxu0 0.0
    %2609 = vmatmul.mubr.f32.gmra.mxu0 %v1636
    %v2610 = vpop.f32.mrf.mxu0
    %v2611 = vadd.f32 0.0, %v2610
    %v2612 = vpop.f32.mrf.mxu0
    %v2613 = vadd.f32 0.0, %v2612
    %2614 = vdwg.mxu0
    %v2615 = vmul.f32 %v2538, %v2538
    %v2616 = vmul.f32 %v2540, %v2540
    %2617 = vmatprep.subr.mxu0 0.0
    %2618 = vmatpush1.msra.mxu0 0.0
    %2619 = vmatprep.subr.mxu0 0.0
    %2620 = vmatpush1.msra.mxu0 0.0
    %2621 = vmatprep.subr.mxu0 0.0
    %2622 = vmatpush1.msra.mxu0 0.0
    %2623 = vmatprep.subr.mxu0 0.0
    %2624 = vmatpush1.msra.mxu0 0.0
    %2625 = vmatprep.subr.mxu0 0.0
    %2626 = vmatpush1.msra.mxu0 0.0
    %2627 = vmatprep.subr.mxu0 0.0
    %2628 = vmatpush1.msra.mxu0 0.0
    %2629 = vmatprep.subr.mxu0 0.0
    %2630 = vmatpush1.msra.mxu0 0.0
    %2631 = vmatprep.subr.mxu0 0.0
    %2632 = vmatpush1.msra.mxu0 0.0
    %2633 = vmatprep.subr.mxu0 0.0
    %2634 = vmatpush1.msra.mxu0 0.0
    %2635 = vmatprep.subr.mxu0 0.0
    %2636 = vmatpush1.msra.mxu0 0.0
    %2637 = vmatprep.subr.mxu0 0.0
    %2638 = vmatpush1.msra.mxu0 0.0
    %2639 = vmatprep.subr.mxu0 0.0
    %2640 = vmatpush1.msra.mxu0 0.0
    %2641 = vmatprep.subr.mxu0 0.0
    %2642 = vmatpush1.msra.mxu0 0.0
    %2643 = vmatprep.subr.mxu0 0.0
    %2644 = vmatpush1.msra.mxu0 0.0
    %2645 = vmatprep.subr.mxu0 0.0
    %2646 = vmatpush1.msra.mxu0 0.0
    %2647 = vmatprep.subr.mxu0 %v2616
    %2648 = vmatpush1.msra.mxu0 %v2615
    %2649 = vmatprep.subr.mxu0 0.0
    %2650 = vmatpush2.msra.mxu0 0.0
    %2651 = vmatprep.subr.mxu0 0.0
    %2652 = vmatpush2.msra.mxu0 0.0
    %2653 = vmatprep.subr.mxu0 0.0
    %2654 = vmatpush2.msra.mxu0 0.0
    %2655 = vmatprep.subr.mxu0 0.0
    %2656 = vmatpush2.msra.mxu0 0.0
    %2657 = vmatprep.subr.mxu0 0.0
    %2658 = vmatpush2.msra.mxu0 0.0
    %2659 = vmatprep.subr.mxu0 0.0
    %2660 = vmatpush2.msra.mxu0 0.0
    %2661 = vmatprep.subr.mxu0 0.0
    %2662 = vmatpush2.msra.mxu0 0.0
    %2663 = vmatprep.subr.mxu0 0.0
    %2664 = vmatpush2.msra.mxu0 0.0
    %2665 = vmatprep.subr.mxu0 0.0
    %2666 = vmatpush2.msra.mxu0 0.0
    %2667 = vmatprep.subr.mxu0 0.0
    %2668 = vmatpush2.msra.mxu0 0.0
    %2669 = vmatprep.subr.mxu0 0.0
    %2670 = vmatpush2.msra.mxu0 0.0
    %2671 = vmatprep.subr.mxu0 0.0
    %2672 = vmatpush2.msra.mxu0 0.0
    %2673 = vmatprep.subr.mxu0 0.0
    %2674 = vmatpush2.msra.mxu0 0.0
    %2675 = vmatprep.subr.mxu0 0.0
    %2676 = vmatpush2.msra.mxu0 0.0
    %2677 = vmatprep.subr.mxu0 0.0
    %2678 = vmatpush2.msra.mxu0 0.0
    %2679 = vmatprep.subr.mxu0 0.0
    %2680 = vmatpush2.msra.mxu0 0.0
    %2681 = vmatprep.mubr.f32.mxu0 0.0
    %2682 = vmatmul.mubr.f32.gmra.mxu0 %v1636
    %v2683 = vpop.f32.mrf.mxu0
    %v2684 = vadd.f32 0.0, %v2683
    %v2685 = vpop.f32.mrf.mxu0
    %v2686 = vadd.f32 0.0, %v2685
    %2687 = vdwg.mxu0
    %v2688 = vmul.f32 %v2611, 0.125
    %v2689 = vmul.f32 %v2613, 0.125
    %v2690 = vmul.f32 %v2684, 0.125
    %v2691 = vmul.f32 %v2686, 0.125
    %v2692 = vmul.f32 %v2688, %v2688
    %v2693 = vmul.f32 %v2689, %v2689
    %v2694 = vsub.f32 %v2690, %v2692
    %v2695 = vsub.f32 %v2691, %v2693
    %v2696 = vmax.f32 %v2694, 0.0
    %v2697 = vmax.f32 %v2695, 0.0
    %v2698 = vld [vmem:[%s5] sm:$0x3]
    %v2699 = vadd.f32 %v2696, 1e-05
    %v2700 = vadd.f32 %v2697, 1e-05
    %v2701 = vrsqrt.pop %v2699
    %v2702 = vrsqrt.pop %v2700
    %v2705 = vcombine.low %v2701, %v2702
    %v2707 = vunpack.c.l.s4 1966171168
    %v2708 = vunpack.c.0.s8 %v2707
    %v2709 = vlaneseq
    %v2710 = vshrl.u32 %v2709, 7
    %v2711 = vsub.s32 %v2708, %v2710
    %v2712 = vrot.slane %v2705, %v2711
    %v2714 = vunpack.c.l.s4 1966171168
    %v2715 = vunpack.c.0.s8 %v2714
    %v2716 = vlaneseq
    %v2717 = vshrl.u32 %v2716, 7
    %v2718 = vsub.s32 %v2715, %v2717
    %v2719 = vrot.slane %v2712, %v2718
    %v2721 = vmul.f32 %v2698, %v2719
    %v2722 = vld [vmem:[%s6] sm:$0x3]
    %v2724 = vlaneseq
    %v2725 = vshrl.u32 %v2724, 7
    %v2726 = vsub.s32 0, %v2725
    %v2727 = vrot.slane %v2721, %v2726
    %v2728 = vlaneseq
    %v2729 = vshrl.u32 %v2728, 7
    %v2730 = vsub.s32 1, %v2729
    %v2731 = vrot.slane %v2721, %v2730
    %v2734 = vmul.f32 %v2688, %v2727
    %v2735 = vmul.f32 %v2689, %v2731
    %v2738 = vcombine.low %v2734, %v2735
    %v2740 = vunpack.c.l.s4 1966171168
    %v2741 = vunpack.c.0.s8 %v2740
    %v2742 = vlaneseq
    %v2743 = vshrl.u32 %v2742, 7
    %v2744 = vsub.s32 %v2741, %v2743
    %v2745 = vrot.slane %v2738, %v2744
    %v2747 = vunpack.c.l.s4 1966171168
    %v2748 = vunpack.c.0.s8 %v2747
    %v2749 = vlaneseq
    %v2750 = vshrl.u32 %v2749, 7
    %v2751 = vsub.s32 %v2748, %v2750
    %v2752 = vrot.slane %v2745, %v2751
    %v2754 = vsub.f32 %v2722, %v2752
    %v2755 = vmul.f32 %v2538, %v2727
    %v2756 = vmul.f32 %v2540, %v2731
    %v2758 = vlaneseq
    %v2759 = vshrl.u32 %v2758, 7
    %v2760 = vsub.s32 0, %v2759
    %v2761 = vrot.slane %v2754, %v2760
    %v2762 = vlaneseq
    %v2763 = vshrl.u32 %v2762, 7
    %v2764 = vsub.s32 1, %v2763
    %v2765 = vrot.slane %v2754, %v2764
    %v2768 = vadd.f32 %v2755, %v2761
    %v2769 = vadd.f32 %v2756, %v2765
    %v2770 = vmax.f32 %v2768, 0.0
    %v2771 = vmax.f32 %v2769, 0.0
    %v2772 = vpack.c.bf16 %v2770, %v2770
    %v2773 = vpack.c.bf16 %v2771, %v2771
    %v2774 = vld [vmem:[#allocation10] sm:$0xf]
    %v2775 = vld [vmem:[#allocation10 + $0x4] sm:$0xf]
    %v2776 = vld [vmem:[#allocation10 + $0x8] sm:$0xf]
    %v2777 = vld [vmem:[#allocation10 + $0xc] sm:$0xf]
    %v2778 = vld [vmem:[#allocation10 + $0x10] sm:$0xf]
    %v2779 = vld [vmem:[#allocation10 + $0x14] sm:$0xf]
    %v2780 = vld [vmem:[#allocation10 + $0x18] sm:$0xf]
    %v2781 = vld [vmem:[#allocation10 + $0x1c] sm:$0xf]
    %v2782 = vld [vmem:[#allocation10 + $0x20] sm:$0xf]
    %v2783 = vld [vmem:[#allocation10 + $0x24] sm:$0xf]
    %v2784 = vld [vmem:[#allocation10 + $0x28] sm:$0xf]
    %v2785 = vld [vmem:[#allocation10 + $0x2c] sm:$0xf]
    %v2786 = vld [vmem:[#allocation10 + $0x30] sm:$0xf]
    %v2787 = vld [vmem:[#allocation10 + $0x34] sm:$0xf]
    %v2788 = vld [vmem:[#allocation10 + $0x38] sm:$0xf]
    %v2789 = vld [vmem:[#allocation10 + $0x3c] sm:$0xf]
    %v2790 = vld [vmem:[#allocation10 + $0x40] sm:$0xf]
    %v2791 = vld [vmem:[#allocation10 + $0x44] sm:$0xf]
    %v2792 = vld [vmem:[#allocation10 + $0x48] sm:$0xf]
    %v2793 = vld [vmem:[#allocation10 + $0x4c] sm:$0xf]
    %v2794 = vld [vmem:[#allocation10 + $0x50] sm:$0xf]
    %v2795 = vld [vmem:[#allocation10 + $0x54] sm:$0xf]
    %v2796 = vld [vmem:[#allocation10 + $0x58] sm:$0xf]
    %v2797 = vld [vmem:[#allocation10 + $0x5c] sm:$0xf]
    %v2798 = vld [vmem:[#allocation10 + $0x60] sm:$0xf]
    %v2799 = vld [vmem:[#allocation10 + $0x64] sm:$0xf]
    %v2800 = vld [vmem:[#allocation10 + $0x68] sm:$0xf]
    %v2801 = vld [vmem:[#allocation10 + $0x6c] sm:$0xf]
    %v2802 = vld [vmem:[#allocation10 + $0x70] sm:$0xf]
    %v2803 = vld [vmem:[#allocation10 + $0x74] sm:$0xf]
    %v2804 = vld [vmem:[#allocation10 + $0x78] sm:$0xf]
    %v2805 = vld [vmem:[#allocation10 + $0x7c] sm:$0xf]
    %v2806 = vld [vmem:[%s8] sm:$0x1]
    %v2808 = vlaneseq
    %v2809 = vshrl.u32 %v2808, 7
    %v2810 = vsub.s32 0, %v2809
    %v2811 = vrot.slane %v2806, %v2810
    %v2845 = vunpack.c.l.b16 %v2774
    %v2846 = vunpack.c.l.b16 %v2775
    %v2847 = vunpack.c.l.b16 %v2776
    %v2848 = vunpack.c.l.b16 %v2777
    %v2849 = vunpack.c.l.b16 %v2778
    %v2850 = vunpack.c.l.b16 %v2779
    %v2851 = vunpack.c.l.b16 %v2780
    %v2852 = vunpack.c.l.b16 %v2781
    %v2853 = vunpack.c.l.b16 %v2782
    %v2854 = vunpack.c.l.b16 %v2783
    %v2855 = vunpack.c.l.b16 %v2784
    %v2856 = vunpack.c.l.b16 %v2785
    %v2857 = vunpack.c.l.b16 %v2786
    %v2858 = vunpack.c.l.b16 %v2787
    %v2859 = vunpack.c.l.b16 %v2788
    %v2860 = vunpack.c.l.b16 %v2789
    %v2861 = vunpack.c.l.b16 %v2790
    %v2862 = vunpack.c.l.b16 %v2791
    %v2863 = vunpack.c.l.b16 %v2792
    %v2864 = vunpack.c.l.b16 %v2793
    %v2865 = vunpack.c.l.b16 %v2794
    %v2866 = vunpack.c.l.b16 %v2795
    %v2867 = vunpack.c.l.b16 %v2796
    %v2868 = vunpack.c.l.b16 %v2797
    %v2869 = vunpack.c.l.b16 %v2798
    %v2870 = vunpack.c.l.b16 %v2799
    %v2871 = vunpack.c.l.b16 %v2800
    %v2872 = vunpack.c.l.b16 %v2801
    %v2873 = vunpack.c.l.b16 %v2802
    %v2874 = vunpack.c.l.b16 %v2803
    %v2875 = vunpack.c.l.b16 %v2804
    %v2876 = vunpack.c.l.b16 %v2805
    %v2877 = vpack.c.b16 %v2846, %v2845
    %v2878 = vpack.c.b16 %v2848, %v2847
    %v2879 = vpack.c.b16 %v2850, %v2849
    %v2880 = vpack.c.b16 %v2852, %v2851
    %v2881 = vpack.c.b16 %v2854, %v2853
    %v2882 = vpack.c.b16 %v2856, %v2855
    %v2883 = vpack.c.b16 %v2858, %v2857
    %v2884 = vpack.c.b16 %v2860, %v2859
    %v2885 = vpack.c.b16 %v2862, %v2861
    %v2886 = vpack.c.b16 %v2864, %v2863
    %v2887 = vpack.c.b16 %v2866, %v2865
    %v2888 = vpack.c.b16 %v2868, %v2867
    %v2889 = vpack.c.b16 %v2870, %v2869
    %v2890 = vpack.c.b16 %v2872, %v2871
    %v2891 = vpack.c.b16 %v2874, %v2873
    %v2892 = vpack.c.b16 %v2876, %v2875
    %2909 = vmatprep.subr.bf16.mxu0 0
    %2910 = vmatpush1.bf16.msra.mxu0 %v2884
    %2911 = vmatprep.subr.bf16.mxu0 0
    %2912 = vmatpush1.bf16.msra.mxu0 %v2883
    %2913 = vmatprep.subr.bf16.mxu0 0
    %2914 = vmatpush1.bf16.msra.mxu0 %v2882
    %2915 = vmatprep.subr.bf16.mxu0 0
    %2916 = vmatpush1.bf16.msra.mxu0 %v2881
    %2917 = vmatprep.subr.bf16.mxu0 0
    %2918 = vmatpush1.bf16.msra.mxu0 %v2880
    %2919 = vmatprep.subr.bf16.mxu0 0
    %2920 = vmatpush1.bf16.msra.mxu0 %v2879
    %2921 = vmatprep.subr.bf16.mxu0 0
    %2922 = vmatpush1.bf16.msra.mxu0 %v2878
    %2923 = vmatprep.subr.bf16.mxu0 0
    %2924 = vmatpush1.bf16.msra.mxu0 %v2877
    %2925 = vmatprep.subr.bf16.mxu0 0
    %2926 = vmatpush2.bf16.msra.mxu0 %v2892
    %2927 = vmatprep.subr.bf16.mxu0 0
    %2928 = vmatpush2.bf16.msra.mxu0 %v2891
    %2929 = vmatprep.subr.bf16.mxu0 0
    %2930 = vmatpush2.bf16.msra.mxu0 %v2890
    %2931 = vmatprep.subr.bf16.mxu0 0
    %2932 = vmatpush2.bf16.msra.mxu0 %v2889
    %2933 = vmatprep.subr.bf16.mxu0 0
    %2934 = vmatpush2.bf16.msra.mxu0 %v2888
    %2935 = vmatprep.subr.bf16.mxu0 0
    %2936 = vmatpush2.bf16.msra.mxu0 %v2887
    %2937 = vmatprep.subr.bf16.mxu0 0
    %2938 = vmatpush2.bf16.msra.mxu0 %v2886
    %2939 = vmatprep.subr.bf16.mxu0 0
    %2940 = vmatpush2.bf16.msra.mxu0 %v2885
    %2941 = vmatprep.mubr.bf16.mxu0 %v2773
    %2942 = vmatmul.mubr.bf16.gmra.mxu0 %v2772
    %v2943 = vpop.f32.mrf.mxu0
    %v2944 = vadd.f32 %v2811, %v2943
    %v2945 = vpop.f32.mrf.mxu0
    %v2946 = vpop.f32.mrf.mxu0
    %v2947 = vpop.f32.mrf.mxu0
    %2948 = vdwg.mxu0
    %2949 = vst [vmem:[#allocation11] sm:$0xff] %v2944
    // Predicated region
    $region58: #{tpu_custom_call.1} parent=1 // pred_check
      _
    $region59: #{tpu_custom_call.1} parent=1 // pred_check_branch
      %2951 = sbr.rel (0) target = $region61
    $region60: #{tpu_custom_call.1} parent=1 // pred_region
      %s2953 = ssub.s32 128, 128
      %2954 = vsyncadd [#allocation4], %s2953
      %s2956 = sshll.u32 [#allocation11], 4
      %s2957 = int_to_ptr.vmem [resolvable:$true] %s2956
      %2959 = dma.vmem_to_hbm [thread:$0]  %s2957, 128, %s9, [#allocation4]
    $region61: #{tpu_custom_call.1} parent=1 // pred_fallthru
      _
    // Predicated region
    $region62: #{tpu_custom_call.1} parent=1 // pred_check
      _
    $region63: #{tpu_custom_call.1} parent=1 // pred_check_branch
      %2961 = sbr.rel (0) target = $region65
    $region64: #{tpu_custom_call.1} parent=1 // pred_region
      %2962 = dma.done [#allocation4], 128
    $region65: #{tpu_custom_call.1} parent=1 // pred_fallthru
      _
    %2963 = vsyncpa [#allocation3], 1
    %2964 = vsyncpa [#allocation6], 1
    %2965 = vsyncpa [#allocation9], 1
    %2966 = vsyncpa [#allocation4], 1

</llo_original>
